<compile_context>
chip_gen: v5e
topology: v5e:2x2
jax: 0.10.0
libtpu: 0.0.40
codegen_flags: <defaults>
</compile_context>

<pallas_src>
import jax
import jax.numpy as jnp
from jax import lax
from jax.experimental import pallas as pl
from jax.experimental.pallas import tpu as pltpu


# ----------------------------- Pallas kernels ------------------------------

def _conv_relu_pool_kernel(p00_ref, p01_ref, p10_ref, p11_ref, w_ref, b_ref,
                           o_ref):
    """Fused im2col-conv + 2x2 max-pool + bias + ReLU.

    Each p??_ref holds the im2col patch rows of one tap of the 2x2 pooling
    window (rows ordered (n, pooled_h, pooled_w)), so the pool is just an
    elementwise max of the four conv accumulators. Bias + ReLU are applied
    once after the max (identical result: +bias and ReLU are monotonic).
    """
    w = w_ref[...]

    def tap(p_ref):
        return jnp.dot(p_ref[...], w, preferred_element_type=jnp.float32)

    acc = jnp.maximum(jnp.maximum(tap(p00_ref), tap(p01_ref)),
                      jnp.maximum(tap(p10_ref), tap(p11_ref)))
    o_ref[...] = jnp.maximum(acc + b_ref[...], 0.0).astype(o_ref.dtype)


def _mlp_kernel(x_ref, w1_ref, b1_ref, w2_ref, b2_ref, w3_ref, b3_ref, o_ref):
    """Fused fc1 -> ReLU -> fc2 -> ReLU -> fc3 (bf16 operands, f32 accum)."""
    h1 = jnp.maximum(
        jnp.dot(x_ref[...], w1_ref[...], preferred_element_type=jnp.float32)
        + b1_ref[...], 0.0).astype(jnp.bfloat16)
    h2 = jnp.maximum(
        jnp.dot(h1, w2_ref[...], preferred_element_type=jnp.float32)
        + b2_ref[...], 0.0).astype(jnp.bfloat16)
    o_ref[...] = (jnp.dot(h2, w3_ref[...], preferred_element_type=jnp.float32)
                  + b3_ref[...]).astype(o_ref.dtype)


# ------------------------------ glue / wrappers -----------------------------

# Fixed row tile: bounds per-step VMEM deterministically (fits v7x's 64 MiB)
# and lets the "parallel" grid axis shard across TensorCores at larger batch.
_ROW_TILE = 512


def _pad_rows(x, m_pad):
    m = x.shape[0]
    return x if m == m_pad else jnp.pad(x, ((0, m_pad - m), (0, 0)))


def conv_relu_pool(p00, p01, p10, p11, w, b, *, tile=_ROW_TILE):
    """One fused Pallas call: conv (im2col matmul) + 2x2 max-pool + bias+ReLU."""
    m, k = p00.shape
    cout = w.shape[1]
    if m <= tile:
        tm, m_pad = m, m               # single full-dim block
    else:
        tm = tile
        m_pad = pl.cdiv(m, tm) * tm    # cdiv grid, zero-padded tail rows
        p00, p01, p10, p11 = (_pad_rows(t, m_pad) for t in (p00, p01, p10, p11))
    patch_spec = pl.BlockSpec((tm, k), lambda i: (i, 0))
    out = pl.pallas_call(
        _conv_relu_pool_kernel,
        out_shape=jax.ShapeDtypeStruct((m_pad, cout), jnp.bfloat16),
        grid=(m_pad // tm,),
        in_specs=[patch_spec, patch_spec, patch_spec, patch_spec,
                  pl.BlockSpec((k, cout), lambda i: (0, 0)),
                  pl.BlockSpec((1, cout), lambda i: (0, 0))],
        out_specs=pl.BlockSpec((tm, cout), lambda i: (i, 0)),
        compiler_params=pltpu.CompilerParams(
            dimension_semantics=("parallel",)),
    )(p00, p01, p10, p11, w, b)
    return out if m_pad == m else out[:m]


def mlp(flat, p, *, tile=_ROW_TILE):
    """One fused Pallas call: fc1 -> ReLU -> fc2 -> ReLU -> fc3 (row-tiled)."""
    n, k = flat.shape
    cout = p["fc3_w"].shape[1]
    if n <= tile:
        tb, n_pad = n, n
    else:
        tb = tile
        n_pad = pl.cdiv(n, tb) * tb
        flat = _pad_rows(flat, n_pad)

    def full(arr):  # weights/biases stay VMEM-resident across grid steps
        return pl.BlockSpec(arr.shape, lambda i: (0, 0))

    out = pl.pallas_call(
        _mlp_kernel,
        out_shape=jax.ShapeDtypeStruct((n_pad, cout), jnp.float32),
        grid=(n_pad // tb,),
        in_specs=[pl.BlockSpec((tb, k), lambda i: (i, 0)),
                  full(p["fc1_w"]), full(p["fc1_b"]),
                  full(p["fc2_w"]), full(p["fc2_b"]),
                  full(p["fc3_w"]), full(p["fc3_b"])],
        out_specs=pl.BlockSpec((tb, cout), lambda i: (i, 0)),
        compiler_params=pltpu.CompilerParams(
            dimension_semantics=("parallel",)),
    )(flat, p["fc1_w"], p["fc1_b"], p["fc2_w"], p["fc2_b"],
      p["fc3_w"], p["fc3_b"])
    return out if n_pad == n else out[:n]


def _pool_tap_patches(x_nhwc, ksize):
    """im2col patches split into the four 2x2 pool-window tap groups.

    Returns four (N * OH/2 * OW/2, Cin*k*k) bf16 matrices; rows ordered
    (n, pooled_h, pooled_w); features channel-major (cin, kh, kw), matching
    the PyTorch (Cout, Cin, kh, kw) weight layout. No lane padding in HBM.
    """
    n, h, w, c = x_nhwc.shape
    oh, ow = h - ksize + 1, w - ksize + 1
    k = c * ksize * ksize
    patches = lax.conv_general_dilated_patches(
        x_nhwc, (ksize, ksize), (1, 1), "VALID",
        dimension_numbers=("NHWC", "HWIO", "NHWC"))      # (N, OH, OW, C*k*k)
    taps = []
    for a in (0, 1):
        for bb in (0, 1):
            t = patches[:, a::2, bb::2, :]               # (N, OH/2, OW/2, K)
            taps.append(t.reshape(n * (oh // 2) * (ow // 2), k)
                        .astype(jnp.bfloat16))
    return taps


# ------------------------------- parameters --------------------------------

def _uniform(key, shape, fan):
    bound = float(fan) ** -0.5
    return jax.random.uniform(key, shape, jnp.float32, -bound, bound)


def _pad_to(x, shape):
    return jnp.pad(x, [(0, t - s) for s, t in zip(x.shape, shape)])


def init_params(key):
    """Returns (kernel params, raw torch-layout f32 params for the reference)."""
    ks = jax.random.split(key, 10)
    raw = {
        "conv1_w": _uniform(ks[0], (6, 3, 5, 5), 75),
        "conv1_b": _uniform(ks[1], (6,), 75),
        "conv2_w": _uniform(ks[2], (16, 6, 5, 5), 150),
        "conv2_b": _uniform(ks[3], (16,), 150),
        "fc1_w": _uniform(ks[4], (120, 400), 400),
        "fc1_b": _uniform(ks[5], (120,), 400),
        "fc2_w": _uniform(ks[6], (84, 120), 120),
        "fc2_b": _uniform(ks[7], (84,), 120),
        "fc3_w": _uniform(ks[8], (10, 84), 84),
        "fc3_b": _uniform(ks[9], (10,), 84),
    }

    p = {}
    # conv weights: torch (Cout, Cin, kh, kw) -> matmul (Cin*kh*kw, Cout) with
    # Cout zero-padded to 128 lanes; K kept at its real size (75 / 150), bf16.
    p["conv1_w"] = _pad_to(raw["conv1_w"].reshape(6, 75).T,
                           (75, 128)).astype(jnp.bfloat16)
    p["conv1_b"] = _pad_to(raw["conv1_b"][None, :], (1, 128))
    p["conv2_w"] = _pad_to(raw["conv2_w"].reshape(16, 150).T,
                           (150, 128)).astype(jnp.bfloat16)
    p["conv2_b"] = _pad_to(raw["conv2_b"][None, :], (1, 128))

    # fc1: torch expects a (c, h, w) flatten; our flat activation is ordered
    # (h, w, c) over the 16 *real* channels, so fold that permutation into the
    # weight once. K stays at the real 400 (no channel padding folded in).
    w = jnp.transpose(raw["fc1_w"].reshape(120, 16, 5, 5), (2, 3, 1, 0))
    p["fc1_w"] = _pad_to(w.reshape(400, 120), (400, 128)).astype(jnp.bfloat16)
    p["fc1_b"] = _pad_to(raw["fc1_b"][None, :], (1, 128))

    p["fc2_w"] = _pad_to(raw["fc2_w"].T, (128, 128)).astype(jnp.bfloat16)
    p["fc2_b"] = _pad_to(raw["fc2_b"][None, :], (1, 128))
    p["fc3_w"] = _pad_to(raw["fc3_w"].T, (128, 128)).astype(jnp.bfloat16)
    p["fc3_b"] = _pad_to(raw["fc3_b"][None, :], (1, 128))
    return p, raw


# -------------------------------- forward ----------------------------------

def net_forward(x_nchw, p):
    x = jnp.transpose(x_nchw, (0, 2, 3, 1)).astype(jnp.float32)   # -> NHWC
    n = x.shape[0]

    # conv1 (3->6, 5x5) + ReLU + 2x2 max-pool: one fused Pallas call.
    taps = _pool_tap_patches(x, 5)                        # 4 x (N*196, 75) bf16
    pooled1 = conv_relu_pool(*taps, p["conv1_w"], p["conv1_b"])  # (N*196, 128)
    pooled1 = pooled1.reshape(n, 14, 14, 128)[..., :6]    # keep 6 real channels

    # conv2 (6->16, 5x5) + ReLU + 2x2 max-pool: one fused Pallas call.
    taps = _pool_tap_patches(pooled1, 5)                  # 4 x (N*25, 150) bf16
    pooled2 = conv_relu_pool(*taps, p["conv2_w"], p["conv2_b"])  # (N*25, 128)

    # fc1 -> ReLU -> fc2 -> ReLU -> fc3: one fused Pallas call. The PyTorch
    # x.view(-1, 400) (c,h,w) ordering is baked into fc1_w; only the 16 real
    # channels are kept so fc1's contraction is the real K=400.
    flat = pooled2.reshape(n, 5, 5, 128)[..., :16].reshape(n, 400)   # bf16
    logits = mlp(flat, p)                                 # (N, 128) lane-dense
    return logits[:, :10]


# ------------------------- pure-JAX f32 reference ---------------------------

def reference_forward(x_nchw, raw):
    """Reference matching the PyTorch module (for a numerical sanity check)."""
    def conv(x, w, b):
        y = lax.conv_general_dilated(
            x, w, (1, 1), "VALID",
            dimension_numbers=("NCHW", "OIHW", "NCHW"))
        return jax.nn.relu(y + b[None, :, None, None])

    def pool(x):
        return lax.reduce_window(x, -jnp.inf, lax.max,
                                 (1, 1, 2, 2), (1, 1, 2, 2), "VALID")

    x = pool(conv(x_nchw, raw["conv1_w"], raw["conv1_b"]))
    x = pool(conv(x, raw["conv2_w"], raw["conv2_b"]))
    x = x.reshape(x.shape[0], 400)                        # (c, h, w) flatten
    x = jax.nn.relu(x @ raw["fc1_w"].T + raw["fc1_b"])
    x = jax.nn.relu(x @ raw["fc2_w"].T + raw["fc2_b"])
    return x @ raw["fc3_w"].T + raw["fc3_b"]


# --------------------------------- main -------------------------------------

if __name__ == "__main__":
    key = jax.random.PRNGKey(0)
    k_param, k_x = jax.random.split(key)

    params, raw = init_params(k_param)
    # Spatial/channel dims are fixed by the architecture (CIFAR: 3x32x32).
    x = jax.random.normal(k_x, (2, 3, 32, 32), jnp.float32)

    out = jax.jit(net_forward)(x, params)
    out = jax.block_until_ready(out)
    assert out.shape == (2, 10) and out.dtype == jnp.float32

    # Numerical sanity check against the pure-JAX reference (bf16-tolerant).
    ref = reference_forward(x, raw)
    assert jnp.allclose(out, ref, atol=5e-2), (out, ref)

    print("KERNEL_OK")
</pallas_src>

<mosaic_0001>
module attributes {stable_mosaic.version = 11 : i64} {
  func.func @_conv_relu_pool_kernel(%arg0: i32, %arg1: memref<392x75xbf16, #tpu.memory_space<vmem>>, %arg2: memref<392x75xbf16, #tpu.memory_space<vmem>>, %arg3: memref<392x75xbf16, #tpu.memory_space<vmem>>, %arg4: memref<392x75xbf16, #tpu.memory_space<vmem>>, %arg5: memref<75x128xbf16, #tpu.memory_space<vmem>>, %arg6: memref<1x128xf32, #tpu.memory_space<vmem>>, %arg7: memref<392x128xbf16, #tpu.memory_space<vmem>>) attributes {dimension_semantics = [#tpu.dimension_semantics<parallel>], iteration_bounds = array<i64: 1>, scalar_prefetch = 0 : i64, scratch_operands = 0 : i64, tpu.core_type = #tpu.core_type<tc>, window_params = [{transform_indices = @transform_0, window_bounds = array<i64: 392, 75>}, {transform_indices = @transform_1, window_bounds = array<i64: 392, 75>}, {transform_indices = @transform_2, window_bounds = array<i64: 392, 75>}, {transform_indices = @transform_3, window_bounds = array<i64: 392, 75>}, {pipeline_mode = #tpu.pipeline_mode<synchronous>, transform_indices = @transform_4, window_bounds = array<i64: 75, 128>}, {pipeline_mode = #tpu.pipeline_mode<synchronous>, transform_indices = @transform_5, window_bounds = array<i64: 1, 128>}, {transform_indices = @transform_6, window_bounds = array<i64: 392, 128>}]} {
    %c0 = arith.constant 0 : index
    %c0_0 = arith.constant 0 : index
    %0 = vector.load %arg5[%c0, %c0_0] : memref<75x128xbf16, #tpu.memory_space<vmem>>, vector<75x128xbf16>
    %c0_1 = arith.constant 0 : index
    %c0_2 = arith.constant 0 : index
    %1 = vector.load %arg1[%c0_1, %c0_2] : memref<392x75xbf16, #tpu.memory_space<vmem>>, vector<392x75xbf16>
    %cst = arith.constant dense<0.000000e+00> : vector<392x128xf32>
    %2 = tpu.matmul %1, %0, %cst {dimension_numbers = #tpu.dot_dimension_numbers<[1], [0], [0], [1], [0, 0, 1, 1], [], []>} : vector<392x75xbf16>, vector<75x128xbf16>, vector<392x128xf32> -> vector<392x128xf32>
    %c0_3 = arith.constant 0 : index
    %c0_4 = arith.constant 0 : index
    %3 = vector.load %arg2[%c0_3, %c0_4] : memref<392x75xbf16, #tpu.memory_space<vmem>>, vector<392x75xbf16>
    %cst_5 = arith.constant dense<0.000000e+00> : vector<392x128xf32>
    %4 = tpu.matmul %3, %0, %cst_5 {dimension_numbers = #tpu.dot_dimension_numbers<[1], [0], [0], [1], [0, 0, 1, 1], [], []>} : vector<392x75xbf16>, vector<75x128xbf16>, vector<392x128xf32> -> vector<392x128xf32>
    %5 = arith.maximumf %2, %4 : vector<392x128xf32>
    %c0_6 = arith.constant 0 : index
    %c0_7 = arith.constant 0 : index
    %6 = vector.load %arg3[%c0_6, %c0_7] : memref<392x75xbf16, #tpu.memory_space<vmem>>, vector<392x75xbf16>
    %cst_8 = arith.constant dense<0.000000e+00> : vector<392x128xf32>
    %7 = tpu.matmul %6, %0, %cst_8 {dimension_numbers = #tpu.dot_dimension_numbers<[1], [0], [0], [1], [0, 0, 1, 1], [], []>} : vector<392x75xbf16>, vector<75x128xbf16>, vector<392x128xf32> -> vector<392x128xf32>
    %c0_9 = arith.constant 0 : index
    %c0_10 = arith.constant 0 : index
    %8 = vector.load %arg4[%c0_9, %c0_10] : memref<392x75xbf16, #tpu.memory_space<vmem>>, vector<392x75xbf16>
    %cst_11 = arith.constant dense<0.000000e+00> : vector<392x128xf32>
    %9 = tpu.matmul %8, %0, %cst_11 {dimension_numbers = #tpu.dot_dimension_numbers<[1], [0], [0], [1], [0, 0, 1, 1], [], []>} : vector<392x75xbf16>, vector<75x128xbf16>, vector<392x128xf32> -> vector<392x128xf32>
    %10 = arith.maximumf %7, %9 : vector<392x128xf32>
    %11 = arith.maximumf %5, %10 : vector<392x128xf32>
    %c0_12 = arith.constant 0 : index
    %c0_13 = arith.constant 0 : index
    %12 = vector.load %arg6[%c0_12, %c0_13] : memref<1x128xf32, #tpu.memory_space<vmem>>, vector<1x128xf32>
    %13 = vector.broadcast %12 : vector<1x128xf32> to vector<392x128xf32>
    %14 = arith.addf %11, %13 : vector<392x128xf32>
    %cst_14 = arith.constant 0.000000e+00 : f32
    %15 = vector.broadcast %cst_14 : f32 to vector<392x128xf32>
    %16 = arith.maximumf %14, %15 : vector<392x128xf32>
    %17 = arith.truncf %16 : vector<392x128xf32> to vector<392x128xbf16>
    %c0_15 = arith.constant 0 : index
    %c0_16 = arith.constant 0 : index
    %18 = vector.load %arg7[%c0_15, %c0_16] : memref<392x128xbf16, #tpu.memory_space<vmem>>, vector<392x128xbf16>
    tpu.vector_store %arg7[%c0_15, %c0_16], %17 {strides = array<i32>} : memref<392x128xbf16, #tpu.memory_space<vmem>>, vector<392x128xbf16>,
    return
  }
  func.func @transform_0(%arg0: i32) -> (i32, i32) {
    %c0_i32 = arith.constant 0 : i32
    %c0_i32_0 = arith.constant 0 : i32
    return %arg0, %c0_i32 : i32, i32
  }
  func.func @transform_1(%arg0: i32) -> (i32, i32) {
    %c0_i32 = arith.constant 0 : i32
    %c0_i32_0 = arith.constant 0 : i32
    return %arg0, %c0_i32 : i32, i32
  }
  func.func @transform_2(%arg0: i32) -> (i32, i32) {
    %c0_i32 = arith.constant 0 : i32
    %c0_i32_0 = arith.constant 0 : i32
    return %arg0, %c0_i32 : i32, i32
  }
  func.func @transform_3(%arg0: i32) -> (i32, i32) {
    %c0_i32 = arith.constant 0 : i32
    %c0_i32_0 = arith.constant 0 : i32
    return %arg0, %c0_i32 : i32, i32
  }
  func.func @transform_4(%arg0: i32) -> (i32, i32) {
    %c0_i32 = arith.constant 0 : i32
    %c0_i32_0 = arith.constant 0 : i32
    %c0_i32_1 = arith.constant 0 : i32
    return %c0_i32, %c0_i32_0 : i32, i32
  }
  func.func @transform_5(%arg0: i32) -> (i32, i32) {
    %c0_i32 = arith.constant 0 : i32
    %c0_i32_0 = arith.constant 0 : i32
    %c0_i32_1 = arith.constant 0 : i32
    return %c0_i32, %c0_i32_0 : i32, i32
  }
  func.func @transform_6(%arg0: i32) -> (i32, i32) {
    %c0_i32 = arith.constant 0 : i32
    %c0_i32_0 = arith.constant 0 : i32
    return %arg0, %c0_i32 : i32, i32
  }
}

module attributes {stable_mosaic.version = 11 : i64} {
  func.func @_conv_relu_pool_kernel(%arg0: i32, %arg1: memref<50x150xbf16, #tpu.memory_space<vmem>>, %arg2: memref<50x150xbf16, #tpu.memory_space<vmem>>, %arg3: memref<50x150xbf16, #tpu.memory_space<vmem>>, %arg4: memref<50x150xbf16, #tpu.memory_space<vmem>>, %arg5: memref<150x128xbf16, #tpu.memory_space<vmem>>, %arg6: memref<1x128xf32, #tpu.memory_space<vmem>>, %arg7: memref<50x128xbf16, #tpu.memory_space<vmem>>) attributes {dimension_semantics = [#tpu.dimension_semantics<parallel>], iteration_bounds = array<i64: 1>, scalar_prefetch = 0 : i64, scratch_operands = 0 : i64, tpu.core_type = #tpu.core_type<tc>, window_params = [{transform_indices = @transform_0, window_bounds = array<i64: 50, 150>}, {transform_indices = @transform_1, window_bounds = array<i64: 50, 150>}, {transform_indices = @transform_2, window_bounds = array<i64: 50, 150>}, {transform_indices = @transform_3, window_bounds = array<i64: 50, 150>}, {pipeline_mode = #tpu.pipeline_mode<synchronous>, transform_indices = @transform_4, window_bounds = array<i64: 150, 128>}, {pipeline_mode = #tpu.pipeline_mode<synchronous>, transform_indices = @transform_5, window_bounds = array<i64: 1, 128>}, {transform_indices = @transform_6, window_bounds = array<i64: 50, 128>}]} {
    %c0 = arith.constant 0 : index
    %c0_0 = arith.constant 0 : index
    %0 = vector.load %arg5[%c0, %c0_0] : memref<150x128xbf16, #tpu.memory_space<vmem>>, vector<150x128xbf16>
    %c0_1 = arith.constant 0 : index
    %c0_2 = arith.constant 0 : index
    %1 = vector.load %arg1[%c0_1, %c0_2] : memref<50x150xbf16, #tpu.memory_space<vmem>>, vector<50x150xbf16>
    %cst = arith.constant dense<0.000000e+00> : vector<50x128xf32>
    %2 = tpu.matmul %1, %0, %cst {dimension_numbers = #tpu.dot_dimension_numbers<[1], [0], [0], [1], [0, 0, 1, 1], [], []>} : vector<50x150xbf16>, vector<150x128xbf16>, vector<50x128xf32> -> vector<50x128xf32>
    %c0_3 = arith.constant 0 : index
    %c0_4 = arith.constant 0 : index
    %3 = vector.load %arg2[%c0_3, %c0_4] : memref<50x150xbf16, #tpu.memory_space<vmem>>, vector<50x150xbf16>
    %cst_5 = arith.constant dense<0.000000e+00> : vector<50x128xf32>
    %4 = tpu.matmul %3, %0, %cst_5 {dimension_numbers = #tpu.dot_dimension_numbers<[1], [0], [0], [1], [0, 0, 1, 1], [], []>} : vector<50x150xbf16>, vector<150x128xbf16>, vector<50x128xf32> -> vector<50x128xf32>
    %5 = arith.maximumf %2, %4 : vector<50x128xf32>
    %c0_6 = arith.constant 0 : index
    %c0_7 = arith.constant 0 : index
    %6 = vector.load %arg3[%c0_6, %c0_7] : memref<50x150xbf16, #tpu.memory_space<vmem>>, vector<50x150xbf16>
    %cst_8 = arith.constant dense<0.000000e+00> : vector<50x128xf32>
    %7 = tpu.matmul %6, %0, %cst_8 {dimension_numbers = #tpu.dot_dimension_numbers<[1], [0], [0], [1], [0, 0, 1, 1], [], []>} : vector<50x150xbf16>, vector<150x128xbf16>, vector<50x128xf32> -> vector<50x128xf32>
    %c0_9 = arith.constant 0 : index
    %c0_10 = arith.constant 0 : index
    %8 = vector.load %arg4[%c0_9, %c0_10] : memref<50x150xbf16, #tpu.memory_space<vmem>>, vector<50x150xbf16>
    %cst_11 = arith.constant dense<0.000000e+00> : vector<50x128xf32>
    %9 = tpu.matmul %8, %0, %cst_11 {dimension_numbers = #tpu.dot_dimension_numbers<[1], [0], [0], [1], [0, 0, 1, 1], [], []>} : vector<50x150xbf16>, vector<150x128xbf16>, vector<50x128xf32> -> vector<50x128xf32>
    %10 = arith.maximumf %7, %9 : vector<50x128xf32>
    %11 = arith.maximumf %5, %10 : vector<50x128xf32>
    %c0_12 = arith.constant 0 : index
    %c0_13 = arith.constant 0 : index
    %12 = vector.load %arg6[%c0_12, %c0_13] : memref<1x128xf32, #tpu.memory_space<vmem>>, vector<1x128xf32>
    %13 = vector.broadcast %12 : vector<1x128xf32> to vector<50x128xf32>
    %14 = arith.addf %11, %13 : vector<50x128xf32>
    %cst_14 = arith.constant 0.000000e+00 : f32
    %15 = vector.broadcast %cst_14 : f32 to vector<50x128xf32>
    %16 = arith.maximumf %14, %15 : vector<50x128xf32>
    %17 = arith.truncf %16 : vector<50x128xf32> to vector<50x128xbf16>
    %c0_15 = arith.constant 0 : index
    %c0_16 = arith.constant 0 : index
    %18 = vector.load %arg7[%c0_15, %c0_16] : memref<50x128xbf16, #tpu.memory_space<vmem>>, vector<50x128xbf16>
    tpu.vector_store %arg7[%c0_15, %c0_16], %17 {strides = array<i32>} : memref<50x128xbf16, #tpu.memory_space<vmem>>, vector<50x128xbf16>,
    return
  }
  func.func @transform_0(%arg0: i32) -> (i32, i32) {
    %c0_i32 = arith.constant 0 : i32
    %c0_i32_0 = arith.constant 0 : i32
    return %arg0, %c0_i32 : i32, i32
  }
  func.func @transform_1(%arg0: i32) -> (i32, i32) {
    %c0_i32 = arith.constant 0 : i32
    %c0_i32_0 = arith.constant 0 : i32
    return %arg0, %c0_i32 : i32, i32
  }
  func.func @transform_2(%arg0: i32) -> (i32, i32) {
    %c0_i32 = arith.constant 0 : i32
    %c0_i32_0 = arith.constant 0 : i32
    return %arg0, %c0_i32 : i32, i32
  }
  func.func @transform_3(%arg0: i32) -> (i32, i32) {
    %c0_i32 = arith.constant 0 : i32
    %c0_i32_0 = arith.constant 0 : i32
    return %arg0, %c0_i32 : i32, i32
  }
  func.func @transform_4(%arg0: i32) -> (i32, i32) {
    %c0_i32 = arith.constant 0 : i32
    %c0_i32_0 = arith.constant 0 : i32
    %c0_i32_1 = arith.constant 0 : i32
    return %c0_i32, %c0_i32_0 : i32, i32
  }
  func.func @transform_5(%arg0: i32) -> (i32, i32) {
    %c0_i32 = arith.constant 0 : i32
    %c0_i32_0 = arith.constant 0 : i32
    %c0_i32_1 = arith.constant 0 : i32
    return %c0_i32, %c0_i32_0 : i32, i32
  }
  func.func @transform_6(%arg0: i32) -> (i32, i32) {
    %c0_i32 = arith.constant 0 : i32
    %c0_i32_0 = arith.constant 0 : i32
    return %arg0, %c0_i32 : i32, i32
  }
}

module attributes {stable_mosaic.version = 11 : i64} {
  func.func @_mlp_kernel(%arg0: i32, %arg1: memref<2x400xbf16, #tpu.memory_space<vmem>>, %arg2: memref<400x128xbf16, #tpu.memory_space<vmem>>, %arg3: memref<1x128xf32, #tpu.memory_space<vmem>>, %arg4: memref<128x128xbf16, #tpu.memory_space<vmem>>, %arg5: memref<1x128xf32, #tpu.memory_space<vmem>>, %arg6: memref<128x128xbf16, #tpu.memory_space<vmem>>, %arg7: memref<1x128xf32, #tpu.memory_space<vmem>>, %arg8: memref<2x128xf32, #tpu.memory_space<vmem>>) attributes {dimension_semantics = [#tpu.dimension_semantics<parallel>], iteration_bounds = array<i64: 1>, scalar_prefetch = 0 : i64, scratch_operands = 0 : i64, tpu.core_type = #tpu.core_type<tc>, window_params = [{transform_indices = @transform_0, window_bounds = array<i64: 2, 400>}, {pipeline_mode = #tpu.pipeline_mode<synchronous>, transform_indices = @transform_1, window_bounds = array<i64: 400, 128>}, {pipeline_mode = #tpu.pipeline_mode<synchronous>, transform_indices = @transform_2, window_bounds = array<i64: 1, 128>}, {pipeline_mode = #tpu.pipeline_mode<synchronous>, transform_indices = @transform_3, window_bounds = array<i64: 128, 128>}, {pipeline_mode = #tpu.pipeline_mode<synchronous>, transform_indices = @transform_4, window_bounds = array<i64: 1, 128>}, {pipeline_mode = #tpu.pipeline_mode<synchronous>, transform_indices = @transform_5, window_bounds = array<i64: 128, 128>}, {pipeline_mode = #tpu.pipeline_mode<synchronous>, transform_indices = @transform_6, window_bounds = array<i64: 1, 128>}, {transform_indices = @transform_7, window_bounds = array<i64: 2, 128>}]} {
    %c0 = arith.constant 0 : index
    %c0_0 = arith.constant 0 : index
    %0 = vector.load %arg1[%c0, %c0_0] : memref<2x400xbf16, #tpu.memory_space<vmem>>, vector<2x400xbf16>
    %c0_1 = arith.constant 0 : index
    %c0_2 = arith.constant 0 : index
    %1 = vector.load %arg2[%c0_1, %c0_2] : memref<400x128xbf16, #tpu.memory_space<vmem>>, vector<400x128xbf16>
    %cst = arith.constant dense<0.000000e+00> : vector<2x128xf32>
    %2 = tpu.matmul %0, %1, %cst {dimension_numbers = #tpu.dot_dimension_numbers<[1], [0], [0], [1], [0, 0, 1, 1], [], []>} : vector<2x400xbf16>, vector<400x128xbf16>, vector<2x128xf32> -> vector<2x128xf32>
    %c0_3 = arith.constant 0 : index
    %c0_4 = arith.constant 0 : index
    %3 = vector.load %arg3[%c0_3, %c0_4] : memref<1x128xf32, #tpu.memory_space<vmem>>, vector<1x128xf32>
    %4 = vector.broadcast %3 : vector<1x128xf32> to vector<2x128xf32>
    %5 = arith.addf %2, %4 : vector<2x128xf32>
    %cst_5 = arith.constant 0.000000e+00 : f32
    %6 = vector.broadcast %cst_5 : f32 to vector<2x128xf32>
    %7 = arith.maximumf %5, %6 : vector<2x128xf32>
    %8 = arith.truncf %7 : vector<2x128xf32> to vector<2x128xbf16>
    %c0_6 = arith.constant 0 : index
    %c0_7 = arith.constant 0 : index
    %9 = vector.load %arg4[%c0_6, %c0_7] : memref<128x128xbf16, #tpu.memory_space<vmem>>, vector<128x128xbf16>
    %cst_8 = arith.constant dense<0.000000e+00> : vector<2x128xf32>
    %10 = tpu.matmul %8, %9, %cst_8 {dimension_numbers = #tpu.dot_dimension_numbers<[1], [0], [0], [1], [0, 0, 1, 1], [], []>} : vector<2x128xbf16>, vector<128x128xbf16>, vector<2x128xf32> -> vector<2x128xf32>
    %c0_9 = arith.constant 0 : index
    %c0_10 = arith.constant 0 : index
    %11 = vector.load %arg5[%c0_9, %c0_10] : memref<1x128xf32, #tpu.memory_space<vmem>>, vector<1x128xf32>
    %12 = vector.broadcast %11 : vector<1x128xf32> to vector<2x128xf32>
    %13 = arith.addf %10, %12 : vector<2x128xf32>
    %cst_11 = arith.constant 0.000000e+00 : f32
    %14 = vector.broadcast %cst_11 : f32 to vector<2x128xf32>
    %15 = arith.maximumf %13, %14 : vector<2x128xf32>
    %16 = arith.truncf %15 : vector<2x128xf32> to vector<2x128xbf16>
    %c0_12 = arith.constant 0 : index
    %c0_13 = arith.constant 0 : index
    %17 = vector.load %arg6[%c0_12, %c0_13] : memref<128x128xbf16, #tpu.memory_space<vmem>>, vector<128x128xbf16>
    %cst_14 = arith.constant dense<0.000000e+00> : vector<2x128xf32>
    %18 = tpu.matmul %16, %17, %cst_14 {dimension_numbers = #tpu.dot_dimension_numbers<[1], [0], [0], [1], [0, 0, 1, 1], [], []>} : vector<2x128xbf16>, vector<128x128xbf16>, vector<2x128xf32> -> vector<2x128xf32>
    %c0_15 = arith.constant 0 : index
    %c0_16 = arith.constant 0 : index
    %19 = vector.load %arg7[%c0_15, %c0_16] : memref<1x128xf32, #tpu.memory_space<vmem>>, vector<1x128xf32>
    %20 = vector.broadcast %19 : vector<1x128xf32> to vector<2x128xf32>
    %21 = arith.addf %18, %20 : vector<2x128xf32>
    %c0_17 = arith.constant 0 : index
    %c0_18 = arith.constant 0 : index
    %22 = vector.load %arg8[%c0_17, %c0_18] : memref<2x128xf32, #tpu.memory_space<vmem>>, vector<2x128xf32>
    tpu.vector_store %arg8[%c0_17, %c0_18], %21 {strides = array<i32>} : memref<2x128xf32, #tpu.memory_space<vmem>>, vector<2x128xf32>,
    return
  }
  func.func @transform_0(%arg0: i32) -> (i32, i32) {
    %c0_i32 = arith.constant 0 : i32
    %c0_i32_0 = arith.constant 0 : i32
    return %arg0, %c0_i32 : i32, i32
  }
  func.func @transform_1(%arg0: i32) -> (i32, i32) {
    %c0_i32 = arith.constant 0 : i32
    %c0_i32_0 = arith.constant 0 : i32
    %c0_i32_1 = arith.constant 0 : i32
    return %c0_i32, %c0_i32_0 : i32, i32
  }
  func.func @transform_2(%arg0: i32) -> (i32, i32) {
    %c0_i32 = arith.constant 0 : i32
    %c0_i32_0 = arith.constant 0 : i32
    %c0_i32_1 = arith.constant 0 : i32
    return %c0_i32, %c0_i32_0 : i32, i32
  }
  func.func @transform_3(%arg0: i32) -> (i32, i32) {
    %c0_i32 = arith.constant 0 : i32
    %c0_i32_0 = arith.constant 0 : i32
    %c0_i32_1 = arith.constant 0 : i32
    return %c0_i32, %c0_i32_0 : i32, i32
  }
  func.func @transform_4(%arg0: i32) -> (i32, i32) {
    %c0_i32 = arith.constant 0 : i32
    %c0_i32_0 = arith.constant 0 : i32
    %c0_i32_1 = arith.constant 0 : i32
    return %c0_i32, %c0_i32_0 : i32, i32
  }
  func.func @transform_5(%arg0: i32) -> (i32, i32) {
    %c0_i32 = arith.constant 0 : i32
    %c0_i32_0 = arith.constant 0 : i32
    %c0_i32_1 = arith.constant 0 : i32
    return %c0_i32, %c0_i32_0 : i32, i32
  }
  func.func @transform_6(%arg0: i32) -> (i32, i32) {
    %c0_i32 = arith.constant 0 : i32
    %c0_i32_0 = arith.constant 0 : i32
    %c0_i32_1 = arith.constant 0 : i32
    return %c0_i32, %c0_i32_0 : i32, i32
  }
  func.func @transform_7(%arg0: i32) -> (i32, i32) {
    %c0_i32 = arith.constant 0 : i32
    %c0_i32_0 = arith.constant 0 : i32
    return %arg0, %c0_i32 : i32, i32
  }
}

</mosaic_0001>

<llo_original>
// kernel: net_forward.4
$region0: #{net_forward.4}
  #allocation0 [shape = 'u32[]', space=smem, size = 0x4, offset = 0x4, fixed_abs, tag = 'smem constant byte address 0x4 - core index']
  #allocation1 [shape = 'u32[72,128]{1,0:T(1,128)}', space=vmem, size = 0x9000, scoped, tag = 'internal scratch']
  %s0 = inlined_call_operand.vmem [shape: bf16[50,150], index: 0, kind: input, shape index: {}]
  %s1 = inlined_call_operand.vmem [shape: bf16[50,150], index: 1, kind: input, shape index: {}]
  %s2 = inlined_call_operand.vmem [shape: bf16[50,150], index: 2, kind: input, shape index: {}]
  %s3 = inlined_call_operand.vmem [shape: bf16[50,150], index: 3, kind: input, shape index: {}]
  %s4 = inlined_call_operand.vmem [shape: bf16[150,128], index: 4, kind: input, shape index: {}]
  %s5 = inlined_call_operand.vmem [shape: f32[1,128], index: 5, kind: input, shape index: {}]
  %s6 = inlined_call_operand.vmem [shape: bf16[50,128], index: 6, kind: output, shape index: {}]
  %s7 = sld [smem:[#allocation0]]
  $region34: #{net_forward.4} parent=0
    _
  %s9 = ssub.s32 1, %s7
  %s10 = scalar_select 0, %s9, %s7
  // Predicated region
  $region2: #{net_forward.4} parent=0 // pred_check
    _
  $region3: #{net_forward.4} parent=0 // pred_check_branch
    %12 = sbr.rel (0) target = $region5
  $region4: #{net_forward.4} parent=0 // pred_region
    _
  $region5: #{net_forward.4} parent=0 // pred_fallthru
    _
  // Predicated region
  $region6: #{net_forward.4} parent=0 // pred_check
    _
  $region7: #{net_forward.4} parent=0 // pred_check_branch
    %14 = sbr.rel (0) target = $region9
  $region8: #{net_forward.4} parent=0 // pred_region
    _
  $region9: #{net_forward.4} parent=0 // pred_fallthru
    _
  // Predicated region
  $region10: #{net_forward.4} parent=0 // pred_check
    _
  $region11: #{net_forward.4} parent=0 // pred_check_branch
    %16 = sbr.rel (0) target = $region13
  $region12: #{net_forward.4} parent=0 // pred_region
    _
  $region13: #{net_forward.4} parent=0 // pred_fallthru
    _
  // Predicated region
  $region14: #{net_forward.4} parent=0 // pred_check
    _
  $region15: #{net_forward.4} parent=0 // pred_check_branch
    %18 = sbr.rel (0) target = $region17
  $region16: #{net_forward.4} parent=0 // pred_region
    _
  $region17: #{net_forward.4} parent=0 // pred_fallthru
    _
  // Predicated region
  $region18: #{net_forward.4} parent=0 // pred_check
    _
  $region19: #{net_forward.4} parent=0 // pred_check_branch
    %20 = sbr.rel (0) target = $region21
  $region20: #{net_forward.4} parent=0 // pred_region
    _
  $region21: #{net_forward.4} parent=0 // pred_fallthru
    _
  // Predicated region
  $region22: #{net_forward.4} parent=0 // pred_check
    _
  $region23: #{net_forward.4} parent=0 // pred_check_branch
    %22 = sbr.rel (0) target = $region25
  $region24: #{net_forward.4} parent=0 // pred_region
    _
  $region25: #{net_forward.4} parent=0 // pred_fallthru
    _
  %v24 = vld [vmem:[%s4] sm:$0xf]
  %v25 = vld [vmem:[%s4 + $0x4] sm:$0xf]
  %v26 = vld [vmem:[%s4 + $0x8] sm:$0xf]
  %v27 = vld [vmem:[%s4 + $0xc] sm:$0xf]
  %v28 = vld [vmem:[%s4 + $0x10] sm:$0xf]
  %v29 = vld [vmem:[%s4 + $0x14] sm:$0xf]
  %v30 = vld [vmem:[%s4 + $0x18] sm:$0xf]
  %v31 = vld [vmem:[%s4 + $0x1c] sm:$0xf]
  %v32 = vld [vmem:[%s4 + $0x20] sm:$0xf]
  %v33 = vld [vmem:[%s4 + $0x24] sm:$0xf]
  %v34 = vld [vmem:[%s4 + $0x28] sm:$0xf]
  %v35 = vld [vmem:[%s4 + $0x2c] sm:$0xf]
  %v36 = vld [vmem:[%s4 + $0x30] sm:$0xf]
  %v37 = vld [vmem:[%s4 + $0x34] sm:$0xf]
  %v38 = vld [vmem:[%s4 + $0x38] sm:$0xf]
  %v39 = vld [vmem:[%s4 + $0x3c] sm:$0xf]
  %v40 = vld [vmem:[%s4 + $0x40] sm:$0xf]
  %v41 = vld [vmem:[%s4 + $0x44] sm:$0xf]
  %v42 = vld [vmem:[%s4 + $0x48] sm:$0x7]
  %v43 = vld [vmem:[%s0] sm:$0xff]
  %v44 = vld [vmem:[%s0 + $0x8] sm:$0xff]
  %v45 = vld [vmem:[%s0 + $0x10] sm:$0xff]
  %v46 = vld [vmem:[%s0 + $0x18] sm:$0xff]
  %v47 = vld [vmem:[%s0 + $0x20] sm:$0xff]
  %v48 = vld [vmem:[%s0 + $0x28] sm:$0xff]
  %v49 = vld [vmem:[%s0 + $0x30] sm:$0x11]
  %v57 = vunpack.c.l.b16 %v43
  %v58 = vunpack.c.h.b16 %v43
  %v59 = vunpack.c.l.b16 %v44
  %v60 = vunpack.c.h.b16 %v44
  %v61 = vunpack.c.l.b16 %v45
  %v62 = vunpack.c.h.b16 %v45
  %v63 = vunpack.c.l.b16 %v46
  %v64 = vunpack.c.h.b16 %v46
  %v65 = vunpack.c.l.b16 %v47
  %v66 = vunpack.c.h.b16 %v47
  %v67 = vunpack.c.l.b16 %v48
  %v68 = vunpack.c.h.b16 %v48
  %v69 = vunpack.c.l.b16 %v49
  %v70 = vunpack.c.h.b16 %v49
  %v71 = vpack.c.b16 %v59, %v57
  %v72 = vpack.c.b16 %v60, %v58
  %v73 = vpack.c.b16 %v63, %v61
  %v74 = vpack.c.b16 %v64, %v62
  %v75 = vpack.c.b16 %v67, %v65
  %v76 = vpack.c.b16 %v68, %v66
  %v77 = vpack.c.b16 %v69, %v69
  %v78 = vpack.c.b16 %v70, %v70
  %v102 = vunpack.c.l.b16 %v24
  %v103 = vunpack.c.l.b16 %v25
  %v104 = vunpack.c.l.b16 %v26
  %v105 = vunpack.c.l.b16 %v27
  %v106 = vunpack.c.l.b16 %v28
  %v107 = vunpack.c.l.b16 %v29
  %v108 = vunpack.c.l.b16 %v30
  %v109 = vunpack.c.l.b16 %v31
  %v110 = vunpack.c.l.b16 %v32
  %v111 = vunpack.c.l.b16 %v33
  %v112 = vunpack.c.l.b16 %v34
  %v113 = vunpack.c.l.b16 %v35
  %v114 = vunpack.c.l.b16 %v36
  %v115 = vunpack.c.l.b16 %v37
  %v116 = vunpack.c.l.b16 %v38
  %v117 = vunpack.c.l.b16 %v39
  %v118 = vunpack.c.l.b16 %v40
  %v119 = vunpack.c.l.b16 %v41
  %v120 = vunpack.c.l.b16 %v42
  %v121 = vpack.c.b16 %v103, %v102
  %v122 = vpack.c.b16 %v105, %v104
  %v123 = vpack.c.b16 %v107, %v106
  %v124 = vpack.c.b16 %v109, %v108
  %v125 = vpack.c.b16 %v111, %v110
  %v126 = vpack.c.b16 %v113, %v112
  %v127 = vpack.c.b16 %v115, %v114
  %v128 = vpack.c.b16 %v117, %v116
  %v129 = vpack.c.b16 %v119, %v118
  %v130 = vpack.c.b16 %v120, %v120
  %vm140 = vcmask 179200
  %v142 = vsel %vm140, %v72, 0
  %v145 = vsel %vm140, %v74, 0
  %v148 = vsel %vm140, %v76, 0
  %v151 = vsel %vm140, %v78, 0
  %vm153 = vcmask 1042432
  %v155 = vsel %vm153, %v130, 0
  %157 = vmatpush.bf16.msra.mxu0 %v128
  %158 = vmatpush.bf16.msra.mxu0 %v127
  %159 = vmatpush.bf16.msra.mxu0 %v126
  %160 = vmatpush.bf16.msra.mxu0 %v125
  %161 = vmatpush.bf16.msra.mxu0 %v124
  %162 = vmatpush.bf16.msra.mxu0 %v123
  %163 = vmatpush.bf16.msra.mxu0 %v122
  %164 = vmatpush.bf16.msra.mxu0 %v121
  %165 = vmatmul.bf16.gmra.mxu0 %v71
  %v166 = vpop.f32.mrf.mxu0
  %v167 = vadd.f32 0.0, %v166
  %v168 = vpop.f32.mrf.mxu0
  %v169 = vadd.f32 0.0, %v168
  %170 = vmatmul.bf16.gmra.mxu0 %v73
  %v171 = vpop.f32.mrf.mxu0
  %v172 = vadd.f32 0.0, %v171
  %v173 = vpop.f32.mrf.mxu0
  %v174 = vadd.f32 0.0, %v173
  %175 = vmatmul.bf16.gmra.mxu0 %v75
  %v176 = vpop.f32.mrf.mxu0
  %v177 = vadd.f32 0.0, %v176
  %v178 = vpop.f32.mrf.mxu0
  %v179 = vadd.f32 0.0, %v178
  %180 = vmatmul.bf16.gmra.mxu0 %v77
  %v181 = vpop.f32.mrf.mxu0
  %v182 = vadd.f32 0.0, %v181
  %v183 = vpop.f32.mrf.mxu0
  %184 = vdwg.mxu0
  %185 = vmatpush.bf16.msra.mxu0 0
  %186 = vmatpush.bf16.msra.mxu0 0
  %187 = vmatpush.bf16.msra.mxu0 0
  %188 = vmatpush.bf16.msra.mxu0 0
  %189 = vmatpush.bf16.msra.mxu0 0
  %190 = vmatpush.bf16.msra.mxu0 0
  %191 = vmatpush.bf16.msra.mxu0 %v155
  %192 = vmatpush.bf16.msra.mxu0 %v129
  %193 = vmatmul.bf16.gmra.mxu0 %v142
  %v194 = vpop.f32.mrf.mxu0
  %v195 = vadd.f32 %v167, %v194
  %v196 = vpop.f32.mrf.mxu0
  %v197 = vadd.f32 %v169, %v196
  %198 = vmatmul.bf16.gmra.mxu0 %v145
  %v199 = vpop.f32.mrf.mxu0
  %v200 = vadd.f32 %v172, %v199
  %v201 = vpop.f32.mrf.mxu0
  %v202 = vadd.f32 %v174, %v201
  %203 = vmatmul.bf16.gmra.mxu0 %v148
  %v204 = vpop.f32.mrf.mxu0
  %v205 = vadd.f32 %v177, %v204
  %v206 = vpop.f32.mrf.mxu0
  %v207 = vadd.f32 %v179, %v206
  %208 = vmatmul.bf16.gmra.mxu0 %v151
  %v209 = vpop.f32.mrf.mxu0
  %v210 = vadd.f32 %v182, %v209
  %v211 = vpop.f32.mrf.mxu0
  %212 = vdwg.mxu0
  %v213 = vld [vmem:[%s1] sm:$0xff]
  %v214 = vld [vmem:[%s1 + $0x8] sm:$0xff]
  %v215 = vld [vmem:[%s1 + $0x10] sm:$0xff]
  %v216 = vld [vmem:[%s1 + $0x18] sm:$0xff]
  %v217 = vld [vmem:[%s1 + $0x20] sm:$0xff]
  %v218 = vld [vmem:[%s1 + $0x28] sm:$0xff]
  %v219 = vld [vmem:[%s1 + $0x30] sm:$0x11]
  %v227 = vunpack.c.l.b16 %v213
  %v228 = vunpack.c.h.b16 %v213
  %v229 = vunpack.c.l.b16 %v214
  %v230 = vunpack.c.h.b16 %v214
  %v231 = vunpack.c.l.b16 %v215
  %v232 = vunpack.c.h.b16 %v215
  %v233 = vunpack.c.l.b16 %v216
  %v234 = vunpack.c.h.b16 %v216
  %v235 = vunpack.c.l.b16 %v217
  %v236 = vunpack.c.h.b16 %v217
  %v237 = vunpack.c.l.b16 %v218
  %v238 = vunpack.c.h.b16 %v218
  %v239 = vunpack.c.l.b16 %v219
  %v240 = vunpack.c.h.b16 %v219
  %v241 = vpack.c.b16 %v229, %v227
  %v242 = vpack.c.b16 %v230, %v228
  %v243 = vpack.c.b16 %v233, %v231
  %v244 = vpack.c.b16 %v234, %v232
  %v245 = vpack.c.b16 %v237, %v235
  %v246 = vpack.c.b16 %v238, %v236
  %v247 = vpack.c.b16 %v239, %v239
  %v248 = vpack.c.b16 %v240, %v240
  %v254 = vsel %vm140, %v242, 0
  %v257 = vsel %vm140, %v244, 0
  %v260 = vsel %vm140, %v246, 0
  %v263 = vsel %vm140, %v248, 0
  %265 = vmatpush.bf16.msra.mxu0 %v128
  %266 = vmatpush.bf16.msra.mxu0 %v127
  %267 = vmatpush.bf16.msra.mxu0 %v126
  %268 = vmatpush.bf16.msra.mxu0 %v125
  %269 = vmatpush.bf16.msra.mxu0 %v124
  %270 = vmatpush.bf16.msra.mxu0 %v123
  %271 = vmatpush.bf16.msra.mxu0 %v122
  %272 = vmatpush.bf16.msra.mxu0 %v121
  %273 = vmatmul.bf16.gmra.mxu0 %v241
  %v274 = vpop.f32.mrf.mxu0
  %v275 = vadd.f32 0.0, %v274
  %v276 = vpop.f32.mrf.mxu0
  %v277 = vadd.f32 0.0, %v276
  %278 = vmatmul.bf16.gmra.mxu0 %v243
  %v279 = vpop.f32.mrf.mxu0
  %v280 = vadd.f32 0.0, %v279
  %v281 = vpop.f32.mrf.mxu0
  %v282 = vadd.f32 0.0, %v281
  %283 = vmatmul.bf16.gmra.mxu0 %v245
  %v284 = vpop.f32.mrf.mxu0
  %v285 = vadd.f32 0.0, %v284
  %v286 = vpop.f32.mrf.mxu0
  %v287 = vadd.f32 0.0, %v286
  %288 = vmatmul.bf16.gmra.mxu0 %v247
  %v289 = vpop.f32.mrf.mxu0
  %v290 = vadd.f32 0.0, %v289
  %v291 = vpop.f32.mrf.mxu0
  %292 = vdwg.mxu0
  %293 = vmatpush.bf16.msra.mxu0 0
  %294 = vmatpush.bf16.msra.mxu0 0
  %295 = vmatpush.bf16.msra.mxu0 0
  %296 = vmatpush.bf16.msra.mxu0 0
  %297 = vmatpush.bf16.msra.mxu0 0
  %298 = vmatpush.bf16.msra.mxu0 0
  %299 = vmatpush.bf16.msra.mxu0 %v155
  %300 = vmatpush.bf16.msra.mxu0 %v129
  %301 = vmatmul.bf16.gmra.mxu0 %v254
  %v302 = vpop.f32.mrf.mxu0
  %v303 = vadd.f32 %v275, %v302
  %v304 = vpop.f32.mrf.mxu0
  %v305 = vadd.f32 %v277, %v304
  %306 = vmatmul.bf16.gmra.mxu0 %v257
  %v307 = vpop.f32.mrf.mxu0
  %v308 = vadd.f32 %v280, %v307
  %v309 = vpop.f32.mrf.mxu0
  %v310 = vadd.f32 %v282, %v309
  %311 = vmatmul.bf16.gmra.mxu0 %v260
  %v312 = vpop.f32.mrf.mxu0
  %v313 = vadd.f32 %v285, %v312
  %v314 = vpop.f32.mrf.mxu0
  %v315 = vadd.f32 %v287, %v314
  %316 = vmatmul.bf16.gmra.mxu0 %v263
  %v317 = vpop.f32.mrf.mxu0
  %v318 = vadd.f32 %v290, %v317
  %v319 = vpop.f32.mrf.mxu0
  %320 = vdwg.mxu0
  %v321 = vmax.f32 %v195, %v303
  %v322 = vmax.f32 %v197, %v305
  %v323 = vmax.f32 %v200, %v308
  %v324 = vmax.f32 %v202, %v310
  %v325 = vmax.f32 %v205, %v313
  %v326 = vmax.f32 %v207, %v315
  %v327 = vmax.f32 %v210, %v318
  %v328 = vld [vmem:[%s2] sm:$0xff]
  %v329 = vld [vmem:[%s2 + $0x8] sm:$0xff]
  %v330 = vld [vmem:[%s2 + $0x10] sm:$0xff]
  %v331 = vld [vmem:[%s2 + $0x18] sm:$0xff]
  %v332 = vld [vmem:[%s2 + $0x20] sm:$0xff]
  %v333 = vld [vmem:[%s2 + $0x28] sm:$0xff]
  %v334 = vld [vmem:[%s2 + $0x30] sm:$0x11]
  %v342 = vunpack.c.l.b16 %v328
  %v343 = vunpack.c.h.b16 %v328
  %v344 = vunpack.c.l.b16 %v329
  %v345 = vunpack.c.h.b16 %v329
  %v346 = vunpack.c.l.b16 %v330
  %v347 = vunpack.c.h.b16 %v330
  %v348 = vunpack.c.l.b16 %v331
  %v349 = vunpack.c.h.b16 %v331
  %v350 = vunpack.c.l.b16 %v332
  %v351 = vunpack.c.h.b16 %v332
  %v352 = vunpack.c.l.b16 %v333
  %v353 = vunpack.c.h.b16 %v333
  %v354 = vunpack.c.l.b16 %v334
  %v355 = vunpack.c.h.b16 %v334
  %v356 = vpack.c.b16 %v344, %v342
  %v357 = vpack.c.b16 %v345, %v343
  %v358 = vpack.c.b16 %v348, %v346
  %v359 = vpack.c.b16 %v349, %v347
  %v360 = vpack.c.b16 %v352, %v350
  %v361 = vpack.c.b16 %v353, %v351
  %v362 = vpack.c.b16 %v354, %v354
  %v363 = vpack.c.b16 %v355, %v355
  %v369 = vsel %vm140, %v357, 0
  %v372 = vsel %vm140, %v359, 0
  %v375 = vsel %vm140, %v361, 0
  %v378 = vsel %vm140, %v363, 0
  %380 = vmatpush.bf16.msra.mxu0 %v128
  %381 = vmatpush.bf16.msra.mxu0 %v127
  %382 = vmatpush.bf16.msra.mxu0 %v126
  %383 = vmatpush.bf16.msra.mxu0 %v125
  %384 = vmatpush.bf16.msra.mxu0 %v124
  %385 = vmatpush.bf16.msra.mxu0 %v123
  %386 = vmatpush.bf16.msra.mxu0 %v122
  %387 = vmatpush.bf16.msra.mxu0 %v121
  %388 = vmatmul.bf16.gmra.mxu0 %v356
  %v389 = vpop.f32.mrf.mxu0
  %v390 = vadd.f32 0.0, %v389
  %v391 = vpop.f32.mrf.mxu0
  %v392 = vadd.f32 0.0, %v391
  %393 = vmatmul.bf16.gmra.mxu0 %v358
  %v394 = vpop.f32.mrf.mxu0
  %v395 = vadd.f32 0.0, %v394
  %v396 = vpop.f32.mrf.mxu0
  %v397 = vadd.f32 0.0, %v396
  %398 = vmatmul.bf16.gmra.mxu0 %v360
  %v399 = vpop.f32.mrf.mxu0
  %v400 = vadd.f32 0.0, %v399
  %v401 = vpop.f32.mrf.mxu0
  %v402 = vadd.f32 0.0, %v401
  %403 = vmatmul.bf16.gmra.mxu0 %v362
  %v404 = vpop.f32.mrf.mxu0
  %v405 = vadd.f32 0.0, %v404
  %v406 = vpop.f32.mrf.mxu0
  %407 = vdwg.mxu0
  %408 = vmatpush.bf16.msra.mxu0 0
  %409 = vmatpush.bf16.msra.mxu0 0
  %410 = vmatpush.bf16.msra.mxu0 0
  %411 = vmatpush.bf16.msra.mxu0 0
  %412 = vmatpush.bf16.msra.mxu0 0
  %413 = vmatpush.bf16.msra.mxu0 0
  %414 = vmatpush.bf16.msra.mxu0 %v155
  %415 = vmatpush.bf16.msra.mxu0 %v129
  %416 = vmatmul.bf16.gmra.mxu0 %v369
  %v417 = vpop.f32.mrf.mxu0
  %v418 = vadd.f32 %v390, %v417
  %v419 = vpop.f32.mrf.mxu0
  %v420 = vadd.f32 %v392, %v419
  %421 = vmatmul.bf16.gmra.mxu0 %v372
  %v422 = vpop.f32.mrf.mxu0
  %v423 = vadd.f32 %v395, %v422
  %v424 = vpop.f32.mrf.mxu0
  %v425 = vadd.f32 %v397, %v424
  %426 = vmatmul.bf16.gmra.mxu0 %v375
  %v427 = vpop.f32.mrf.mxu0
  %v428 = vadd.f32 %v400, %v427
  %v429 = vpop.f32.mrf.mxu0
  %v430 = vadd.f32 %v402, %v429
  %431 = vmatmul.bf16.gmra.mxu0 %v378
  %v432 = vpop.f32.mrf.mxu0
  %v433 = vadd.f32 %v405, %v432
  %v434 = vpop.f32.mrf.mxu0
  %435 = vdwg.mxu0
  %v436 = vld [vmem:[%s3] sm:$0xff]
  %v437 = vld [vmem:[%s3 + $0x8] sm:$0xff]
  %v438 = vld [vmem:[%s3 + $0x10] sm:$0xff]
  %v439 = vld [vmem:[%s3 + $0x18] sm:$0xff]
  %v440 = vld [vmem:[%s3 + $0x20] sm:$0xff]
  %v441 = vld [vmem:[%s3 + $0x28] sm:$0xff]
  %v442 = vld [vmem:[%s3 + $0x30] sm:$0x11]
  %v450 = vunpack.c.l.b16 %v436
  %v451 = vunpack.c.h.b16 %v436
  %v452 = vunpack.c.l.b16 %v437
  %v453 = vunpack.c.h.b16 %v437
  %v454 = vunpack.c.l.b16 %v438
  %v455 = vunpack.c.h.b16 %v438
  %v456 = vunpack.c.l.b16 %v439
  %v457 = vunpack.c.h.b16 %v439
  %v458 = vunpack.c.l.b16 %v440
  %v459 = vunpack.c.h.b16 %v440
  %v460 = vunpack.c.l.b16 %v441
  %v461 = vunpack.c.h.b16 %v441
  %v462 = vunpack.c.l.b16 %v442
  %v463 = vunpack.c.h.b16 %v442
  %v464 = vpack.c.b16 %v452, %v450
  %v465 = vpack.c.b16 %v453, %v451
  %v466 = vpack.c.b16 %v456, %v454
  %v467 = vpack.c.b16 %v457, %v455
  %v468 = vpack.c.b16 %v460, %v458
  %v469 = vpack.c.b16 %v461, %v459
  %v470 = vpack.c.b16 %v462, %v462
  %v471 = vpack.c.b16 %v463, %v463
  %v477 = vsel %vm140, %v465, 0
  %v480 = vsel %vm140, %v467, 0
  %v483 = vsel %vm140, %v469, 0
  %v486 = vsel %vm140, %v471, 0
  %488 = vmatpush.bf16.msra.mxu0 %v128
  %489 = vmatpush.bf16.msra.mxu0 %v127
  %490 = vmatpush.bf16.msra.mxu0 %v126
  %491 = vmatpush.bf16.msra.mxu0 %v125
  %492 = vmatpush.bf16.msra.mxu0 %v124
  %493 = vmatpush.bf16.msra.mxu0 %v123
  %494 = vmatpush.bf16.msra.mxu0 %v122
  %495 = vmatpush.bf16.msra.mxu0 %v121
  %496 = vmatmul.bf16.gmra.mxu0 %v464
  %v497 = vpop.f32.mrf.mxu0
  %v498 = vadd.f32 0.0, %v497
  %v499 = vpop.f32.mrf.mxu0
  %v500 = vadd.f32 0.0, %v499
  %501 = vmatmul.bf16.gmra.mxu0 %v466
  %v502 = vpop.f32.mrf.mxu0
  %v503 = vadd.f32 0.0, %v502
  %v504 = vpop.f32.mrf.mxu0
  %v505 = vadd.f32 0.0, %v504
  %506 = vmatmul.bf16.gmra.mxu0 %v468
  %v507 = vpop.f32.mrf.mxu0
  %v508 = vadd.f32 0.0, %v507
  %v509 = vpop.f32.mrf.mxu0
  %v510 = vadd.f32 0.0, %v509
  %511 = vmatmul.bf16.gmra.mxu0 %v470
  %v512 = vpop.f32.mrf.mxu0
  %v513 = vadd.f32 0.0, %v512
  %v514 = vpop.f32.mrf.mxu0
  %515 = vdwg.mxu0
  %516 = vmatpush.bf16.msra.mxu0 0
  %517 = vmatpush.bf16.msra.mxu0 0
  %518 = vmatpush.bf16.msra.mxu0 0
  %519 = vmatpush.bf16.msra.mxu0 0
  %520 = vmatpush.bf16.msra.mxu0 0
  %521 = vmatpush.bf16.msra.mxu0 0
  %522 = vmatpush.bf16.msra.mxu0 %v155
  %523 = vmatpush.bf16.msra.mxu0 %v129
  %524 = vmatmul.bf16.gmra.mxu0 %v477
  %v525 = vpop.f32.mrf.mxu0
  %v526 = vadd.f32 %v498, %v525
  %v527 = vpop.f32.mrf.mxu0
  %v528 = vadd.f32 %v500, %v527
  %529 = vmatmul.bf16.gmra.mxu0 %v480
  %v530 = vpop.f32.mrf.mxu0
  %v531 = vadd.f32 %v503, %v530
  %v532 = vpop.f32.mrf.mxu0
  %v533 = vadd.f32 %v505, %v532
  %534 = vmatmul.bf16.gmra.mxu0 %v483
  %v535 = vpop.f32.mrf.mxu0
  %v536 = vadd.f32 %v508, %v535
  %v537 = vpop.f32.mrf.mxu0
  %v538 = vadd.f32 %v510, %v537
  %539 = vmatmul.bf16.gmra.mxu0 %v486
  %v540 = vpop.f32.mrf.mxu0
  %v541 = vadd.f32 %v513, %v540
  %v542 = vpop.f32.mrf.mxu0
  %543 = vdwg.mxu0
  %v544 = vmax.f32 %v418, %v526
  %v545 = vmax.f32 %v420, %v528
  %v546 = vmax.f32 %v423, %v531
  %v547 = vmax.f32 %v425, %v533
  %v548 = vmax.f32 %v428, %v536
  %v549 = vmax.f32 %v430, %v538
  %v550 = vmax.f32 %v433, %v541
  %v551 = vmax.f32 %v321, %v544
  %v552 = vmax.f32 %v322, %v545
  %v553 = vmax.f32 %v323, %v546
  %v554 = vmax.f32 %v324, %v547
  %v555 = vmax.f32 %v325, %v548
  %v556 = vmax.f32 %v326, %v549
  %v557 = vmax.f32 %v327, %v550
  %v558 = vld [vmem:[%s5] sm:$0x1]
  %v560 = vperm.slane %v558, 0
  %v562 = vadd.f32 %v551, %v560
  %v563 = vadd.f32 %v552, %v560
  %v564 = vadd.f32 %v553, %v560
  %v565 = vadd.f32 %v554, %v560
  %v566 = vadd.f32 %v555, %v560
  %v567 = vadd.f32 %v556, %v560
  %v568 = vadd.f32 %v557, %v560
  %v569 = vmax.f32 %v562, 0.0
  %v570 = vmax.f32 %v563, 0.0
  %v571 = vmax.f32 %v564, 0.0
  %v572 = vmax.f32 %v565, 0.0
  %v573 = vmax.f32 %v566, 0.0
  %v574 = vmax.f32 %v567, 0.0
  %v575 = vmax.f32 %v568, 0.0
  %v576 = vpack.c.bf16 %v569, %v569
  %v577 = vpack.c.bf16 %v570, %v570
  %v578 = vpack.c.bf16 %v571, %v571
  %v579 = vpack.c.bf16 %v572, %v572
  %v580 = vpack.c.bf16 %v573, %v573
  %v581 = vpack.c.bf16 %v574, %v574
  %v582 = vpack.c.bf16 %v575, %v575
  %583 = vst [vmem:[%s6] sm:$0xf] %v576
  %584 = vst [vmem:[%s6 + $0x4] sm:$0xf] %v577
  %585 = vst [vmem:[%s6 + $0x8] sm:$0xf] %v578
  %586 = vst [vmem:[%s6 + $0xc] sm:$0xf] %v579
  %587 = vst [vmem:[%s6 + $0x10] sm:$0xf] %v580
  %588 = vst [vmem:[%s6 + $0x14] sm:$0xf] %v581
  %589 = vst [vmem:[%s6 + $0x18] sm:$0x1] %v582
  // Predicated region
  $region26: #{net_forward.4} parent=0 // pred_check
    _
  $region27: #{net_forward.4} parent=0 // pred_check_branch
    %591 = sbr.rel (0) target = $region29
  $region28: #{net_forward.4} parent=0 // pred_region
    _
  $region29: #{net_forward.4} parent=0 // pred_fallthru
    _
  // Predicated region
  $region30: #{net_forward.4} parent=0 // pred_check
    _
  $region31: #{net_forward.4} parent=0 // pred_check_branch
    %593 = sbr.rel (0) target = $region33
  $region32: #{net_forward.4} parent=0 // pred_region
    _
  $region33: #{net_forward.4} parent=0 // pred_fallthru
    _

// kernel: net_forward.3
$region0: #{net_forward.3}
  #allocation0 [shape = 'u32[]', space=smem, size = 0x4, offset = 0x4, fixed_abs, tag = 'smem constant byte address 0x4 - core index']
  #allocation1 [shape = 'u32[72,128]{1,0:T(1,128)}', space=vmem, size = 0x9000, scoped, tag = 'internal scratch']
  %s0 = inlined_call_operand.vmem [shape: bf16[392,75], index: 0, kind: input, shape index: {}]
  %s1 = inlined_call_operand.vmem [shape: bf16[392,75], index: 1, kind: input, shape index: {}]
  %s2 = inlined_call_operand.vmem [shape: bf16[392,75], index: 2, kind: input, shape index: {}]
  %s3 = inlined_call_operand.vmem [shape: bf16[392,75], index: 3, kind: input, shape index: {}]
  %s4 = inlined_call_operand.vmem [shape: bf16[75,128], index: 4, kind: input, shape index: {}]
  %s5 = inlined_call_operand.vmem [shape: f32[1,128], index: 5, kind: input, shape index: {}]
  %s6 = inlined_call_operand.vmem [shape: bf16[392,128], index: 6, kind: output, shape index: {}]
  %s7 = sld [smem:[#allocation0]]
  $region34: #{net_forward.3} parent=0
    _
  %s9 = ssub.s32 1, %s7
  %s10 = scalar_select 0, %s9, %s7
  // Predicated region
  $region2: #{net_forward.3} parent=0 // pred_check
    _
  $region3: #{net_forward.3} parent=0 // pred_check_branch
    %12 = sbr.rel (0) target = $region5
  $region4: #{net_forward.3} parent=0 // pred_region
    _
  $region5: #{net_forward.3} parent=0 // pred_fallthru
    _
  // Predicated region
  $region6: #{net_forward.3} parent=0 // pred_check
    _
  $region7: #{net_forward.3} parent=0 // pred_check_branch
    %14 = sbr.rel (0) target = $region9
  $region8: #{net_forward.3} parent=0 // pred_region
    _
  $region9: #{net_forward.3} parent=0 // pred_fallthru
    _
  // Predicated region
  $region10: #{net_forward.3} parent=0 // pred_check
    _
  $region11: #{net_forward.3} parent=0 // pred_check_branch
    %16 = sbr.rel (0) target = $region13
  $region12: #{net_forward.3} parent=0 // pred_region
    _
  $region13: #{net_forward.3} parent=0 // pred_fallthru
    _
  // Predicated region
  $region14: #{net_forward.3} parent=0 // pred_check
    _
  $region15: #{net_forward.3} parent=0 // pred_check_branch
    %18 = sbr.rel (0) target = $region17
  $region16: #{net_forward.3} parent=0 // pred_region
    _
  $region17: #{net_forward.3} parent=0 // pred_fallthru
    _
  // Predicated region
  $region18: #{net_forward.3} parent=0 // pred_check
    _
  $region19: #{net_forward.3} parent=0 // pred_check_branch
    %20 = sbr.rel (0) target = $region21
  $region20: #{net_forward.3} parent=0 // pred_region
    _
  $region21: #{net_forward.3} parent=0 // pred_fallthru
    _
  // Predicated region
  $region22: #{net_forward.3} parent=0 // pred_check
    _
  $region23: #{net_forward.3} parent=0 // pred_check_branch
    %22 = sbr.rel (0) target = $region25
  $region24: #{net_forward.3} parent=0 // pred_region
    _
  $region25: #{net_forward.3} parent=0 // pred_fallthru
    _
  %v24 = vld [vmem:[%s4] sm:$0xf]
  %v25 = vld [vmem:[%s4 + $0x4] sm:$0xf]
  %v26 = vld [vmem:[%s4 + $0x8] sm:$0xf]
  %v27 = vld [vmem:[%s4 + $0xc] sm:$0xf]
  %v28 = vld [vmem:[%s4 + $0x10] sm:$0xf]
  %v29 = vld [vmem:[%s4 + $0x14] sm:$0xf]
  %v30 = vld [vmem:[%s4 + $0x18] sm:$0xf]
  %v31 = vld [vmem:[%s4 + $0x1c] sm:$0xf]
  %v32 = vld [vmem:[%s4 + $0x20] sm:$0xf]
  %v33 = vld [vmem:[%s4 + $0x24] sm:$0x3]
  %v34 = vld [vmem:[%s0] sm:$0xf]
  %v35 = vld [vmem:[%s0 + $0x4] sm:$0xf]
  %v36 = vld [vmem:[%s0 + $0x8] sm:$0xf]
  %v37 = vld [vmem:[%s0 + $0xc] sm:$0xf]
  %v38 = vld [vmem:[%s0 + $0x10] sm:$0xf]
  %v39 = vld [vmem:[%s0 + $0x14] sm:$0xf]
  %v40 = vld [vmem:[%s0 + $0x18] sm:$0xf]
  %v41 = vld [vmem:[%s0 + $0x1c] sm:$0xf]
  %v42 = vld [vmem:[%s0 + $0x20] sm:$0xf]
  %v43 = vld [vmem:[%s0 + $0x24] sm:$0xf]
  %v44 = vld [vmem:[%s0 + $0x28] sm:$0xf]
  %v45 = vld [vmem:[%s0 + $0x2c] sm:$0xf]
  %v46 = vld [vmem:[%s0 + $0x30] sm:$0xf]
  %v47 = vld [vmem:[%s0 + $0x34] sm:$0xf]
  %v48 = vld [vmem:[%s0 + $0x38] sm:$0xf]
  %v49 = vld [vmem:[%s0 + $0x3c] sm:$0xf]
  %v50 = vld [vmem:[%s0 + $0x40] sm:$0xf]
  %v51 = vld [vmem:[%s0 + $0x44] sm:$0xf]
  %v52 = vld [vmem:[%s0 + $0x48] sm:$0xf]
  %v53 = vld [vmem:[%s0 + $0x4c] sm:$0xf]
  %v54 = vld [vmem:[%s0 + $0x50] sm:$0xf]
  %v55 = vld [vmem:[%s0 + $0x54] sm:$0xf]
  %v56 = vld [vmem:[%s0 + $0x58] sm:$0xf]
  %v57 = vld [vmem:[%s0 + $0x5c] sm:$0xf]
  %v58 = vld [vmem:[%s0 + $0x60] sm:$0xf]
  %v59 = vld [vmem:[%s0 + $0x64] sm:$0xf]
  %v60 = vld [vmem:[%s0 + $0x68] sm:$0xf]
  %v61 = vld [vmem:[%s0 + $0x6c] sm:$0xf]
  %v62 = vld [vmem:[%s0 + $0x70] sm:$0xf]
  %v63 = vld [vmem:[%s0 + $0x74] sm:$0xf]
  %v64 = vld [vmem:[%s0 + $0x78] sm:$0xf]
  %v65 = vld [vmem:[%s0 + $0x7c] sm:$0xf]
  %v66 = vld [vmem:[%s0 + $0x80] sm:$0xf]
  %v67 = vld [vmem:[%s0 + $0x84] sm:$0xf]
  %v68 = vld [vmem:[%s0 + $0x88] sm:$0xf]
  %v69 = vld [vmem:[%s0 + $0x8c] sm:$0xf]
  %v70 = vld [vmem:[%s0 + $0x90] sm:$0xf]
  %v71 = vld [vmem:[%s0 + $0x94] sm:$0xf]
  %v72 = vld [vmem:[%s0 + $0x98] sm:$0xf]
  %v73 = vld [vmem:[%s0 + $0x9c] sm:$0xf]
  %v74 = vld [vmem:[%s0 + $0xa0] sm:$0xf]
  %v75 = vld [vmem:[%s0 + $0xa4] sm:$0xf]
  %v76 = vld [vmem:[%s0 + $0xa8] sm:$0xf]
  %v77 = vld [vmem:[%s0 + $0xac] sm:$0xf]
  %v78 = vld [vmem:[%s0 + $0xb0] sm:$0xf]
  %v79 = vld [vmem:[%s0 + $0xb4] sm:$0xf]
  %v80 = vld [vmem:[%s0 + $0xb8] sm:$0xf]
  %v81 = vld [vmem:[%s0 + $0xbc] sm:$0xf]
  %v82 = vld [vmem:[%s0 + $0xc0] sm:$0xf]
  %v132 = vunpack.c.l.b16 %v34
  %v133 = vunpack.c.l.b16 %v35
  %v134 = vunpack.c.l.b16 %v36
  %v135 = vunpack.c.l.b16 %v37
  %v136 = vunpack.c.l.b16 %v38
  %v137 = vunpack.c.l.b16 %v39
  %v138 = vunpack.c.l.b16 %v40
  %v139 = vunpack.c.l.b16 %v41
  %v140 = vunpack.c.l.b16 %v42
  %v141 = vunpack.c.l.b16 %v43
  %v142 = vunpack.c.l.b16 %v44
  %v143 = vunpack.c.l.b16 %v45
  %v144 = vunpack.c.l.b16 %v46
  %v145 = vunpack.c.l.b16 %v47
  %v146 = vunpack.c.l.b16 %v48
  %v147 = vunpack.c.l.b16 %v49
  %v148 = vunpack.c.l.b16 %v50
  %v149 = vunpack.c.l.b16 %v51
  %v150 = vunpack.c.l.b16 %v52
  %v151 = vunpack.c.l.b16 %v53
  %v152 = vunpack.c.l.b16 %v54
  %v153 = vunpack.c.l.b16 %v55
  %v154 = vunpack.c.l.b16 %v56
  %v155 = vunpack.c.l.b16 %v57
  %v156 = vunpack.c.l.b16 %v58
  %v157 = vunpack.c.l.b16 %v59
  %v158 = vunpack.c.l.b16 %v60
  %v159 = vunpack.c.l.b16 %v61
  %v160 = vunpack.c.l.b16 %v62
  %v161 = vunpack.c.l.b16 %v63
  %v162 = vunpack.c.l.b16 %v64
  %v163 = vunpack.c.l.b16 %v65
  %v164 = vunpack.c.l.b16 %v66
  %v165 = vunpack.c.l.b16 %v67
  %v166 = vunpack.c.l.b16 %v68
  %v167 = vunpack.c.l.b16 %v69
  %v168 = vunpack.c.l.b16 %v70
  %v169 = vunpack.c.l.b16 %v71
  %v170 = vunpack.c.l.b16 %v72
  %v171 = vunpack.c.l.b16 %v73
  %v172 = vunpack.c.l.b16 %v74
  %v173 = vunpack.c.l.b16 %v75
  %v174 = vunpack.c.l.b16 %v76
  %v175 = vunpack.c.l.b16 %v77
  %v176 = vunpack.c.l.b16 %v78
  %v177 = vunpack.c.l.b16 %v79
  %v178 = vunpack.c.l.b16 %v80
  %v179 = vunpack.c.l.b16 %v81
  %v180 = vunpack.c.l.b16 %v82
  %v181 = vpack.c.b16 %v133, %v132
  %v182 = vpack.c.b16 %v135, %v134
  %v183 = vpack.c.b16 %v137, %v136
  %v184 = vpack.c.b16 %v139, %v138
  %v185 = vpack.c.b16 %v141, %v140
  %v186 = vpack.c.b16 %v143, %v142
  %v187 = vpack.c.b16 %v145, %v144
  %v188 = vpack.c.b16 %v147, %v146
  %v189 = vpack.c.b16 %v149, %v148
  %v190 = vpack.c.b16 %v151, %v150
  %v191 = vpack.c.b16 %v153, %v152
  %v192 = vpack.c.b16 %v155, %v154
  %v193 = vpack.c.b16 %v157, %v156
  %v194 = vpack.c.b16 %v159, %v158
  %v195 = vpack.c.b16 %v161, %v160
  %v196 = vpack.c.b16 %v163, %v162
  %v197 = vpack.c.b16 %v165, %v164
  %v198 = vpack.c.b16 %v167, %v166
  %v199 = vpack.c.b16 %v169, %v168
  %v200 = vpack.c.b16 %v171, %v170
  %v201 = vpack.c.b16 %v173, %v172
  %v202 = vpack.c.b16 %v175, %v174
  %v203 = vpack.c.b16 %v177, %v176
  %v204 = vpack.c.b16 %v179, %v178
  %v205 = vpack.c.b16 %v180, %v180
  %v216 = vunpack.c.l.b16 %v24
  %v217 = vunpack.c.l.b16 %v25
  %v218 = vunpack.c.l.b16 %v26
  %v219 = vunpack.c.l.b16 %v27
  %v220 = vunpack.c.l.b16 %v28
  %v221 = vunpack.c.l.b16 %v29
  %v222 = vunpack.c.l.b16 %v30
  %v223 = vunpack.c.l.b16 %v31
  %v224 = vunpack.c.l.b16 %v32
  %v225 = vunpack.c.l.b16 %v33
  %v226 = vpack.c.b16 %v217, %v216
  %v227 = vpack.c.b16 %v219, %v218
  %v228 = vpack.c.b16 %v221, %v220
  %v229 = vpack.c.b16 %v223, %v222
  %v230 = vpack.c.b16 %v225, %v224
  %vm235 = vcmask 613376
  %v237 = vsel %vm235, %v181, 0
  %v240 = vsel %vm235, %v182, 0
  %v243 = vsel %vm235, %v183, 0
  %v246 = vsel %vm235, %v184, 0
  %v249 = vsel %vm235, %v185, 0
  %v252 = vsel %vm235, %v186, 0
  %v255 = vsel %vm235, %v187, 0
  %v258 = vsel %vm235, %v188, 0
  %v261 = vsel %vm235, %v189, 0
  %v264 = vsel %vm235, %v190, 0
  %v267 = vsel %vm235, %v191, 0
  %v270 = vsel %vm235, %v192, 0
  %v273 = vsel %vm235, %v193, 0
  %v276 = vsel %vm235, %v194, 0
  %v279 = vsel %vm235, %v195, 0
  %v282 = vsel %vm235, %v196, 0
  %v285 = vsel %vm235, %v197, 0
  %v288 = vsel %vm235, %v198, 0
  %v291 = vsel %vm235, %v199, 0
  %v294 = vsel %vm235, %v200, 0
  %v297 = vsel %vm235, %v201, 0
  %v300 = vsel %vm235, %v202, 0
  %v303 = vsel %vm235, %v203, 0
  %v306 = vsel %vm235, %v204, 0
  %v309 = vsel %vm235, %v205, 0
  %vm311 = vcmask 1044480
  %vm312 = vcmask 1045504
  %v313 = vsel %vm311, 4294967295, 65535
  %v314 = vsel %vm312, %v313, 0
  %v316 = vand.u32 %v230, %v314
  %318 = vmatpush.bf16.msra.mxu0 0
  %319 = vmatpush.bf16.msra.mxu0 0
  %320 = vmatpush.bf16.msra.mxu0 0
  %321 = vmatpush.bf16.msra.mxu0 %v316
  %322 = vmatpush.bf16.msra.mxu0 %v229
  %323 = vmatpush.bf16.msra.mxu0 %v228
  %324 = vmatpush.bf16.msra.mxu0 %v227
  %325 = vmatpush.bf16.msra.mxu0 %v226
  %326 = vmatmul.bf16.gmra.mxu0 %v237
  %v327 = vpop.f32.mrf.mxu0
  %v328 = vadd.f32 0.0, %v327
  %v329 = vpop.f32.mrf.mxu0
  %v330 = vadd.f32 0.0, %v329
  %331 = vmatmul.bf16.gmra.mxu0 %v240
  %v332 = vpop.f32.mrf.mxu0
  %v333 = vadd.f32 0.0, %v332
  %v334 = vpop.f32.mrf.mxu0
  %v335 = vadd.f32 0.0, %v334
  %336 = vmatmul.bf16.gmra.mxu0 %v243
  %v337 = vpop.f32.mrf.mxu0
  %v338 = vadd.f32 0.0, %v337
  %v339 = vpop.f32.mrf.mxu0
  %v340 = vadd.f32 0.0, %v339
  %341 = vmatmul.bf16.gmra.mxu0 %v246
  %v342 = vpop.f32.mrf.mxu0
  %v343 = vadd.f32 0.0, %v342
  %v344 = vpop.f32.mrf.mxu0
  %v345 = vadd.f32 0.0, %v344
  %346 = vmatmul.bf16.gmra.mxu0 %v249
  %v347 = vpop.f32.mrf.mxu0
  %v348 = vadd.f32 0.0, %v347
  %v349 = vpop.f32.mrf.mxu0
  %v350 = vadd.f32 0.0, %v349
  %351 = vmatmul.bf16.gmra.mxu0 %v252
  %v352 = vpop.f32.mrf.mxu0
  %v353 = vadd.f32 0.0, %v352
  %v354 = vpop.f32.mrf.mxu0
  %v355 = vadd.f32 0.0, %v354
  %356 = vmatmul.bf16.gmra.mxu0 %v255
  %v357 = vpop.f32.mrf.mxu0
  %v358 = vadd.f32 0.0, %v357
  %v359 = vpop.f32.mrf.mxu0
  %v360 = vadd.f32 0.0, %v359
  %361 = vmatmul.bf16.gmra.mxu0 %v258
  %v362 = vpop.f32.mrf.mxu0
  %v363 = vadd.f32 0.0, %v362
  %v364 = vpop.f32.mrf.mxu0
  %v365 = vadd.f32 0.0, %v364
  %366 = vmatmul.bf16.gmra.mxu0 %v261
  %v367 = vpop.f32.mrf.mxu0
  %v368 = vadd.f32 0.0, %v367
  %v369 = vpop.f32.mrf.mxu0
  %v370 = vadd.f32 0.0, %v369
  %371 = vmatmul.bf16.gmra.mxu0 %v264
  %v372 = vpop.f32.mrf.mxu0
  %v373 = vadd.f32 0.0, %v372
  %v374 = vpop.f32.mrf.mxu0
  %v375 = vadd.f32 0.0, %v374
  %376 = vmatmul.bf16.gmra.mxu0 %v267
  %v377 = vpop.f32.mrf.mxu0
  %v378 = vadd.f32 0.0, %v377
  %v379 = vpop.f32.mrf.mxu0
  %v380 = vadd.f32 0.0, %v379
  %381 = vmatmul.bf16.gmra.mxu0 %v270
  %v382 = vpop.f32.mrf.mxu0
  %v383 = vadd.f32 0.0, %v382
  %v384 = vpop.f32.mrf.mxu0
  %v385 = vadd.f32 0.0, %v384
  %386 = vmatmul.bf16.gmra.mxu0 %v273
  %v387 = vpop.f32.mrf.mxu0
  %v388 = vadd.f32 0.0, %v387
  %v389 = vpop.f32.mrf.mxu0
  %v390 = vadd.f32 0.0, %v389
  %391 = vmatmul.bf16.gmra.mxu0 %v276
  %v392 = vpop.f32.mrf.mxu0
  %v393 = vadd.f32 0.0, %v392
  %v394 = vpop.f32.mrf.mxu0
  %v395 = vadd.f32 0.0, %v394
  %396 = vmatmul.bf16.gmra.mxu0 %v279
  %v397 = vpop.f32.mrf.mxu0
  %v398 = vadd.f32 0.0, %v397
  %v399 = vpop.f32.mrf.mxu0
  %v400 = vadd.f32 0.0, %v399
  %401 = vmatmul.bf16.gmra.mxu0 %v282
  %v402 = vpop.f32.mrf.mxu0
  %v403 = vadd.f32 0.0, %v402
  %v404 = vpop.f32.mrf.mxu0
  %v405 = vadd.f32 0.0, %v404
  %406 = vmatmul.bf16.gmra.mxu0 %v285
  %v407 = vpop.f32.mrf.mxu0
  %v408 = vadd.f32 0.0, %v407
  %v409 = vpop.f32.mrf.mxu0
  %v410 = vadd.f32 0.0, %v409
  %411 = vmatmul.bf16.gmra.mxu0 %v288
  %v412 = vpop.f32.mrf.mxu0
  %v413 = vadd.f32 0.0, %v412
  %v414 = vpop.f32.mrf.mxu0
  %v415 = vadd.f32 0.0, %v414
  %416 = vmatmul.bf16.gmra.mxu0 %v291
  %v417 = vpop.f32.mrf.mxu0
  %v418 = vadd.f32 0.0, %v417
  %v419 = vpop.f32.mrf.mxu0
  %v420 = vadd.f32 0.0, %v419
  %421 = vmatmul.bf16.gmra.mxu0 %v294
  %v422 = vpop.f32.mrf.mxu0
  %v423 = vadd.f32 0.0, %v422
  %v424 = vpop.f32.mrf.mxu0
  %v425 = vadd.f32 0.0, %v424
  %426 = vmatmul.bf16.gmra.mxu0 %v297
  %v427 = vpop.f32.mrf.mxu0
  %v428 = vadd.f32 0.0, %v427
  %v429 = vpop.f32.mrf.mxu0
  %v430 = vadd.f32 0.0, %v429
  %431 = vmatmul.bf16.gmra.mxu0 %v300
  %v432 = vpop.f32.mrf.mxu0
  %v433 = vadd.f32 0.0, %v432
  %v434 = vpop.f32.mrf.mxu0
  %v435 = vadd.f32 0.0, %v434
  %436 = vmatmul.bf16.gmra.mxu0 %v303
  %v437 = vpop.f32.mrf.mxu0
  %v438 = vadd.f32 0.0, %v437
  %v439 = vpop.f32.mrf.mxu0
  %v440 = vadd.f32 0.0, %v439
  %441 = vmatmul.bf16.gmra.mxu0 %v306
  %v442 = vpop.f32.mrf.mxu0
  %v443 = vadd.f32 0.0, %v442
  %v444 = vpop.f32.mrf.mxu0
  %v445 = vadd.f32 0.0, %v444
  %446 = vmatmul.bf16.gmra.mxu0 %v309
  %v447 = vpop.f32.mrf.mxu0
  %v448 = vadd.f32 0.0, %v447
  %v449 = vpop.f32.mrf.mxu0
  %450 = vdwg.mxu0
  %v451 = vld [vmem:[%s1] sm:$0xf]
  %v452 = vld [vmem:[%s1 + $0x4] sm:$0xf]
  %v453 = vld [vmem:[%s1 + $0x8] sm:$0xf]
  %v454 = vld [vmem:[%s1 + $0xc] sm:$0xf]
  %v455 = vld [vmem:[%s1 + $0x10] sm:$0xf]
  %v456 = vld [vmem:[%s1 + $0x14] sm:$0xf]
  %v457 = vld [vmem:[%s1 + $0x18] sm:$0xf]
  %v458 = vld [vmem:[%s1 + $0x1c] sm:$0xf]
  %v459 = vld [vmem:[%s1 + $0x20] sm:$0xf]
  %v460 = vld [vmem:[%s1 + $0x24] sm:$0xf]
  %v461 = vld [vmem:[%s1 + $0x28] sm:$0xf]
  %v462 = vld [vmem:[%s1 + $0x2c] sm:$0xf]
  %v463 = vld [vmem:[%s1 + $0x30] sm:$0xf]
  %v464 = vld [vmem:[%s1 + $0x34] sm:$0xf]
  %v465 = vld [vmem:[%s1 + $0x38] sm:$0xf]
  %v466 = vld [vmem:[%s1 + $0x3c] sm:$0xf]
  %v467 = vld [vmem:[%s1 + $0x40] sm:$0xf]
  %v468 = vld [vmem:[%s1 + $0x44] sm:$0xf]
  %v469 = vld [vmem:[%s1 + $0x48] sm:$0xf]
  %v470 = vld [vmem:[%s1 + $0x4c] sm:$0xf]
  %v471 = vld [vmem:[%s1 + $0x50] sm:$0xf]
  %v472 = vld [vmem:[%s1 + $0x54] sm:$0xf]
  %v473 = vld [vmem:[%s1 + $0x58] sm:$0xf]
  %v474 = vld [vmem:[%s1 + $0x5c] sm:$0xf]
  %v475 = vld [vmem:[%s1 + $0x60] sm:$0xf]
  %v476 = vld [vmem:[%s1 + $0x64] sm:$0xf]
  %v477 = vld [vmem:[%s1 + $0x68] sm:$0xf]
  %v478 = vld [vmem:[%s1 + $0x6c] sm:$0xf]
  %v479 = vld [vmem:[%s1 + $0x70] sm:$0xf]
  %v480 = vld [vmem:[%s1 + $0x74] sm:$0xf]
  %v481 = vld [vmem:[%s1 + $0x78] sm:$0xf]
  %v482 = vld [vmem:[%s1 + $0x7c] sm:$0xf]
  %v483 = vld [vmem:[%s1 + $0x80] sm:$0xf]
  %v484 = vld [vmem:[%s1 + $0x84] sm:$0xf]
  %v485 = vld [vmem:[%s1 + $0x88] sm:$0xf]
  %v486 = vld [vmem:[%s1 + $0x8c] sm:$0xf]
  %v487 = vld [vmem:[%s1 + $0x90] sm:$0xf]
  %v488 = vld [vmem:[%s1 + $0x94] sm:$0xf]
  %v489 = vld [vmem:[%s1 + $0x98] sm:$0xf]
  %v490 = vld [vmem:[%s1 + $0x9c] sm:$0xf]
  %v491 = vld [vmem:[%s1 + $0xa0] sm:$0xf]
  %v492 = vld [vmem:[%s1 + $0xa4] sm:$0xf]
  %v493 = vld [vmem:[%s1 + $0xa8] sm:$0xf]
  %v494 = vld [vmem:[%s1 + $0xac] sm:$0xf]
  %v495 = vld [vmem:[%s1 + $0xb0] sm:$0xf]
  %v496 = vld [vmem:[%s1 + $0xb4] sm:$0xf]
  %v497 = vld [vmem:[%s1 + $0xb8] sm:$0xf]
  %v498 = vld [vmem:[%s1 + $0xbc] sm:$0xf]
  %v499 = vld [vmem:[%s1 + $0xc0] sm:$0xf]
  %v549 = vunpack.c.l.b16 %v451
  %v550 = vunpack.c.l.b16 %v452
  %v551 = vunpack.c.l.b16 %v453
  %v552 = vunpack.c.l.b16 %v454
  %v553 = vunpack.c.l.b16 %v455
  %v554 = vunpack.c.l.b16 %v456
  %v555 = vunpack.c.l.b16 %v457
  %v556 = vunpack.c.l.b16 %v458
  %v557 = vunpack.c.l.b16 %v459
  %v558 = vunpack.c.l.b16 %v460
  %v559 = vunpack.c.l.b16 %v461
  %v560 = vunpack.c.l.b16 %v462
  %v561 = vunpack.c.l.b16 %v463
  %v562 = vunpack.c.l.b16 %v464
  %v563 = vunpack.c.l.b16 %v465
  %v564 = vunpack.c.l.b16 %v466
  %v565 = vunpack.c.l.b16 %v467
  %v566 = vunpack.c.l.b16 %v468
  %v567 = vunpack.c.l.b16 %v469
  %v568 = vunpack.c.l.b16 %v470
  %v569 = vunpack.c.l.b16 %v471
  %v570 = vunpack.c.l.b16 %v472
  %v571 = vunpack.c.l.b16 %v473
  %v572 = vunpack.c.l.b16 %v474
  %v573 = vunpack.c.l.b16 %v475
  %v574 = vunpack.c.l.b16 %v476
  %v575 = vunpack.c.l.b16 %v477
  %v576 = vunpack.c.l.b16 %v478
  %v577 = vunpack.c.l.b16 %v479
  %v578 = vunpack.c.l.b16 %v480
  %v579 = vunpack.c.l.b16 %v481
  %v580 = vunpack.c.l.b16 %v482
  %v581 = vunpack.c.l.b16 %v483
  %v582 = vunpack.c.l.b16 %v484
  %v583 = vunpack.c.l.b16 %v485
  %v584 = vunpack.c.l.b16 %v486
  %v585 = vunpack.c.l.b16 %v487
  %v586 = vunpack.c.l.b16 %v488
  %v587 = vunpack.c.l.b16 %v489
  %v588 = vunpack.c.l.b16 %v490
  %v589 = vunpack.c.l.b16 %v491
  %v590 = vunpack.c.l.b16 %v492
  %v591 = vunpack.c.l.b16 %v493
  %v592 = vunpack.c.l.b16 %v494
  %v593 = vunpack.c.l.b16 %v495
  %v594 = vunpack.c.l.b16 %v496
  %v595 = vunpack.c.l.b16 %v497
  %v596 = vunpack.c.l.b16 %v498
  %v597 = vunpack.c.l.b16 %v499
  %v598 = vpack.c.b16 %v550, %v549
  %v599 = vpack.c.b16 %v552, %v551
  %v600 = vpack.c.b16 %v554, %v553
  %v601 = vpack.c.b16 %v556, %v555
  %v602 = vpack.c.b16 %v558, %v557
  %v603 = vpack.c.b16 %v560, %v559
  %v604 = vpack.c.b16 %v562, %v561
  %v605 = vpack.c.b16 %v564, %v563
  %v606 = vpack.c.b16 %v566, %v565
  %v607 = vpack.c.b16 %v568, %v567
  %v608 = vpack.c.b16 %v570, %v569
  %v609 = vpack.c.b16 %v572, %v571
  %v610 = vpack.c.b16 %v574, %v573
  %v611 = vpack.c.b16 %v576, %v575
  %v612 = vpack.c.b16 %v578, %v577
  %v613 = vpack.c.b16 %v580, %v579
  %v614 = vpack.c.b16 %v582, %v581
  %v615 = vpack.c.b16 %v584, %v583
  %v616 = vpack.c.b16 %v586, %v585
  %v617 = vpack.c.b16 %v588, %v587
  %v618 = vpack.c.b16 %v590, %v589
  %v619 = vpack.c.b16 %v592, %v591
  %v620 = vpack.c.b16 %v594, %v593
  %v621 = vpack.c.b16 %v596, %v595
  %v622 = vpack.c.b16 %v597, %v597
  %v624 = vsel %vm235, %v598, 0
  %v627 = vsel %vm235, %v599, 0
  %v630 = vsel %vm235, %v600, 0
  %v633 = vsel %vm235, %v601, 0
  %v636 = vsel %vm235, %v602, 0
  %v639 = vsel %vm235, %v603, 0
  %v642 = vsel %vm235, %v604, 0
  %v645 = vsel %vm235, %v605, 0
  %v648 = vsel %vm235, %v606, 0
  %v651 = vsel %vm235, %v607, 0
  %v654 = vsel %vm235, %v608, 0
  %v657 = vsel %vm235, %v609, 0
  %v660 = vsel %vm235, %v610, 0
  %v663 = vsel %vm235, %v611, 0
  %v666 = vsel %vm235, %v612, 0
  %v669 = vsel %vm235, %v613, 0
  %v672 = vsel %vm235, %v614, 0
  %v675 = vsel %vm235, %v615, 0
  %v678 = vsel %vm235, %v616, 0
  %v681 = vsel %vm235, %v617, 0
  %v684 = vsel %vm235, %v618, 0
  %v687 = vsel %vm235, %v619, 0
  %v690 = vsel %vm235, %v620, 0
  %v693 = vsel %vm235, %v621, 0
  %v696 = vsel %vm235, %v622, 0
  %698 = vmatpush.bf16.msra.mxu0 0
  %699 = vmatpush.bf16.msra.mxu0 0
  %700 = vmatpush.bf16.msra.mxu0 0
  %701 = vmatpush.bf16.msra.mxu0 %v316
  %702 = vmatpush.bf16.msra.mxu0 %v229
  %703 = vmatpush.bf16.msra.mxu0 %v228
  %704 = vmatpush.bf16.msra.mxu0 %v227
  %705 = vmatpush.bf16.msra.mxu0 %v226
  %706 = vmatmul.bf16.gmra.mxu0 %v624
  %v707 = vpop.f32.mrf.mxu0
  %v708 = vadd.f32 0.0, %v707
  %v709 = vpop.f32.mrf.mxu0
  %v710 = vadd.f32 0.0, %v709
  %711 = vmatmul.bf16.gmra.mxu0 %v627
  %v712 = vpop.f32.mrf.mxu0
  %v713 = vadd.f32 0.0, %v712
  %v714 = vpop.f32.mrf.mxu0
  %v715 = vadd.f32 0.0, %v714
  %716 = vmatmul.bf16.gmra.mxu0 %v630
  %v717 = vpop.f32.mrf.mxu0
  %v718 = vadd.f32 0.0, %v717
  %v719 = vpop.f32.mrf.mxu0
  %v720 = vadd.f32 0.0, %v719
  %721 = vmatmul.bf16.gmra.mxu0 %v633
  %v722 = vpop.f32.mrf.mxu0
  %v723 = vadd.f32 0.0, %v722
  %v724 = vpop.f32.mrf.mxu0
  %v725 = vadd.f32 0.0, %v724
  %726 = vmatmul.bf16.gmra.mxu0 %v636
  %v727 = vpop.f32.mrf.mxu0
  %v728 = vadd.f32 0.0, %v727
  %v729 = vpop.f32.mrf.mxu0
  %v730 = vadd.f32 0.0, %v729
  %731 = vmatmul.bf16.gmra.mxu0 %v639
  %v732 = vpop.f32.mrf.mxu0
  %v733 = vadd.f32 0.0, %v732
  %v734 = vpop.f32.mrf.mxu0
  %v735 = vadd.f32 0.0, %v734
  %736 = vmatmul.bf16.gmra.mxu0 %v642
  %v737 = vpop.f32.mrf.mxu0
  %v738 = vadd.f32 0.0, %v737
  %v739 = vpop.f32.mrf.mxu0
  %v740 = vadd.f32 0.0, %v739
  %741 = vmatmul.bf16.gmra.mxu0 %v645
  %v742 = vpop.f32.mrf.mxu0
  %v743 = vadd.f32 0.0, %v742
  %v744 = vpop.f32.mrf.mxu0
  %v745 = vadd.f32 0.0, %v744
  %746 = vmatmul.bf16.gmra.mxu0 %v648
  %v747 = vpop.f32.mrf.mxu0
  %v748 = vadd.f32 0.0, %v747
  %v749 = vpop.f32.mrf.mxu0
  %v750 = vadd.f32 0.0, %v749
  %751 = vmatmul.bf16.gmra.mxu0 %v651
  %v752 = vpop.f32.mrf.mxu0
  %v753 = vadd.f32 0.0, %v752
  %v754 = vpop.f32.mrf.mxu0
  %v755 = vadd.f32 0.0, %v754
  %756 = vmatmul.bf16.gmra.mxu0 %v654
  %v757 = vpop.f32.mrf.mxu0
  %v758 = vadd.f32 0.0, %v757
  %v759 = vpop.f32.mrf.mxu0
  %v760 = vadd.f32 0.0, %v759
  %761 = vmatmul.bf16.gmra.mxu0 %v657
  %v762 = vpop.f32.mrf.mxu0
  %v763 = vadd.f32 0.0, %v762
  %v764 = vpop.f32.mrf.mxu0
  %v765 = vadd.f32 0.0, %v764
  %766 = vmatmul.bf16.gmra.mxu0 %v660
  %v767 = vpop.f32.mrf.mxu0
  %v768 = vadd.f32 0.0, %v767
  %v769 = vpop.f32.mrf.mxu0
  %v770 = vadd.f32 0.0, %v769
  %771 = vmatmul.bf16.gmra.mxu0 %v663
  %v772 = vpop.f32.mrf.mxu0
  %v773 = vadd.f32 0.0, %v772
  %v774 = vpop.f32.mrf.mxu0
  %v775 = vadd.f32 0.0, %v774
  %776 = vmatmul.bf16.gmra.mxu0 %v666
  %v777 = vpop.f32.mrf.mxu0
  %v778 = vadd.f32 0.0, %v777
  %v779 = vpop.f32.mrf.mxu0
  %v780 = vadd.f32 0.0, %v779
  %781 = vmatmul.bf16.gmra.mxu0 %v669
  %v782 = vpop.f32.mrf.mxu0
  %v783 = vadd.f32 0.0, %v782
  %v784 = vpop.f32.mrf.mxu0
  %v785 = vadd.f32 0.0, %v784
  %786 = vmatmul.bf16.gmra.mxu0 %v672
  %v787 = vpop.f32.mrf.mxu0
  %v788 = vadd.f32 0.0, %v787
  %v789 = vpop.f32.mrf.mxu0
  %v790 = vadd.f32 0.0, %v789
  %791 = vmatmul.bf16.gmra.mxu0 %v675
  %v792 = vpop.f32.mrf.mxu0
  %v793 = vadd.f32 0.0, %v792
  %v794 = vpop.f32.mrf.mxu0
  %v795 = vadd.f32 0.0, %v794
  %796 = vmatmul.bf16.gmra.mxu0 %v678
  %v797 = vpop.f32.mrf.mxu0
  %v798 = vadd.f32 0.0, %v797
  %v799 = vpop.f32.mrf.mxu0
  %v800 = vadd.f32 0.0, %v799
  %801 = vmatmul.bf16.gmra.mxu0 %v681
  %v802 = vpop.f32.mrf.mxu0
  %v803 = vadd.f32 0.0, %v802
  %v804 = vpop.f32.mrf.mxu0
  %v805 = vadd.f32 0.0, %v804
  %806 = vmatmul.bf16.gmra.mxu0 %v684
  %v807 = vpop.f32.mrf.mxu0
  %v808 = vadd.f32 0.0, %v807
  %v809 = vpop.f32.mrf.mxu0
  %v810 = vadd.f32 0.0, %v809
  %811 = vmatmul.bf16.gmra.mxu0 %v687
  %v812 = vpop.f32.mrf.mxu0
  %v813 = vadd.f32 0.0, %v812
  %v814 = vpop.f32.mrf.mxu0
  %v815 = vadd.f32 0.0, %v814
  %816 = vmatmul.bf16.gmra.mxu0 %v690
  %v817 = vpop.f32.mrf.mxu0
  %v818 = vadd.f32 0.0, %v817
  %v819 = vpop.f32.mrf.mxu0
  %v820 = vadd.f32 0.0, %v819
  %821 = vmatmul.bf16.gmra.mxu0 %v693
  %v822 = vpop.f32.mrf.mxu0
  %v823 = vadd.f32 0.0, %v822
  %v824 = vpop.f32.mrf.mxu0
  %v825 = vadd.f32 0.0, %v824
  %826 = vmatmul.bf16.gmra.mxu0 %v696
  %v827 = vpop.f32.mrf.mxu0
  %v828 = vadd.f32 0.0, %v827
  %v829 = vpop.f32.mrf.mxu0
  %830 = vdwg.mxu0
  %v831 = vmax.f32 %v328, %v708
  %v832 = vmax.f32 %v330, %v710
  %v833 = vmax.f32 %v333, %v713
  %v834 = vmax.f32 %v335, %v715
  %v835 = vmax.f32 %v338, %v718
  %v836 = vmax.f32 %v340, %v720
  %v837 = vmax.f32 %v343, %v723
  %v838 = vmax.f32 %v345, %v725
  %v839 = vmax.f32 %v348, %v728
  %v840 = vmax.f32 %v350, %v730
  %v841 = vmax.f32 %v353, %v733
  %v842 = vmax.f32 %v355, %v735
  %v843 = vmax.f32 %v358, %v738
  %v844 = vmax.f32 %v360, %v740
  %v845 = vmax.f32 %v363, %v743
  %v846 = vmax.f32 %v365, %v745
  %v847 = vmax.f32 %v368, %v748
  %v848 = vmax.f32 %v370, %v750
  %v849 = vmax.f32 %v373, %v753
  %v850 = vmax.f32 %v375, %v755
  %v851 = vmax.f32 %v378, %v758
  %v852 = vmax.f32 %v380, %v760
  %v853 = vmax.f32 %v383, %v763
  %v854 = vmax.f32 %v385, %v765
  %v855 = vmax.f32 %v388, %v768
  %v856 = vmax.f32 %v390, %v770
  %v857 = vmax.f32 %v393, %v773
  %v858 = vmax.f32 %v395, %v775
  %v859 = vmax.f32 %v398, %v778
  %v860 = vmax.f32 %v400, %v780
  %v861 = vmax.f32 %v403, %v783
  %v862 = vmax.f32 %v405, %v785
  %v863 = vmax.f32 %v408, %v788
  %v864 = vmax.f32 %v410, %v790
  %v865 = vmax.f32 %v413, %v793
  %v866 = vmax.f32 %v415, %v795
  %v867 = vmax.f32 %v418, %v798
  %v868 = vmax.f32 %v420, %v800
  %v869 = vmax.f32 %v423, %v803
  %v870 = vmax.f32 %v425, %v805
  %v871 = vmax.f32 %v428, %v808
  %v872 = vmax.f32 %v430, %v810
  %v873 = vmax.f32 %v433, %v813
  %v874 = vmax.f32 %v435, %v815
  %v875 = vmax.f32 %v438, %v818
  %v876 = vmax.f32 %v440, %v820
  %v877 = vmax.f32 %v443, %v823
  %v878 = vmax.f32 %v445, %v825
  %v879 = vmax.f32 %v448, %v828
  %v880 = vld [vmem:[%s2] sm:$0xf]
  %v881 = vld [vmem:[%s2 + $0x4] sm:$0xf]
  %v882 = vld [vmem:[%s2 + $0x8] sm:$0xf]
  %v883 = vld [vmem:[%s2 + $0xc] sm:$0xf]
  %v884 = vld [vmem:[%s2 + $0x10] sm:$0xf]
  %v885 = vld [vmem:[%s2 + $0x14] sm:$0xf]
  %v886 = vld [vmem:[%s2 + $0x18] sm:$0xf]
  %v887 = vld [vmem:[%s2 + $0x1c] sm:$0xf]
  %v888 = vld [vmem:[%s2 + $0x20] sm:$0xf]
  %v889 = vld [vmem:[%s2 + $0x24] sm:$0xf]
  %v890 = vld [vmem:[%s2 + $0x28] sm:$0xf]
  %v891 = vld [vmem:[%s2 + $0x2c] sm:$0xf]
  %v892 = vld [vmem:[%s2 + $0x30] sm:$0xf]
  %v893 = vld [vmem:[%s2 + $0x34] sm:$0xf]
  %v894 = vld [vmem:[%s2 + $0x38] sm:$0xf]
  %v895 = vld [vmem:[%s2 + $0x3c] sm:$0xf]
  %v896 = vld [vmem:[%s2 + $0x40] sm:$0xf]
  %v897 = vld [vmem:[%s2 + $0x44] sm:$0xf]
  %v898 = vld [vmem:[%s2 + $0x48] sm:$0xf]
  %v899 = vld [vmem:[%s2 + $0x4c] sm:$0xf]
  %v900 = vld [vmem:[%s2 + $0x50] sm:$0xf]
  %v901 = vld [vmem:[%s2 + $0x54] sm:$0xf]
  %v902 = vld [vmem:[%s2 + $0x58] sm:$0xf]
  %v903 = vld [vmem:[%s2 + $0x5c] sm:$0xf]
  %v904 = vld [vmem:[%s2 + $0x60] sm:$0xf]
  %v905 = vld [vmem:[%s2 + $0x64] sm:$0xf]
  %v906 = vld [vmem:[%s2 + $0x68] sm:$0xf]
  %v907 = vld [vmem:[%s2 + $0x6c] sm:$0xf]
  %v908 = vld [vmem:[%s2 + $0x70] sm:$0xf]
  %v909 = vld [vmem:[%s2 + $0x74] sm:$0xf]
  %v910 = vld [vmem:[%s2 + $0x78] sm:$0xf]
  %v911 = vld [vmem:[%s2 + $0x7c] sm:$0xf]
  %v912 = vld [vmem:[%s2 + $0x80] sm:$0xf]
  %v913 = vld [vmem:[%s2 + $0x84] sm:$0xf]
  %v914 = vld [vmem:[%s2 + $0x88] sm:$0xf]
  %v915 = vld [vmem:[%s2 + $0x8c] sm:$0xf]
  %v916 = vld [vmem:[%s2 + $0x90] sm:$0xf]
  %v917 = vld [vmem:[%s2 + $0x94] sm:$0xf]
  %v918 = vld [vmem:[%s2 + $0x98] sm:$0xf]
  %v919 = vld [vmem:[%s2 + $0x9c] sm:$0xf]
  %v920 = vld [vmem:[%s2 + $0xa0] sm:$0xf]
  %v921 = vld [vmem:[%s2 + $0xa4] sm:$0xf]
  %v922 = vld [vmem:[%s2 + $0xa8] sm:$0xf]
  %v923 = vld [vmem:[%s2 + $0xac] sm:$0xf]
  %v924 = vld [vmem:[%s2 + $0xb0] sm:$0xf]
  %v925 = vld [vmem:[%s2 + $0xb4] sm:$0xf]
  %v926 = vld [vmem:[%s2 + $0xb8] sm:$0xf]
  %v927 = vld [vmem:[%s2 + $0xbc] sm:$0xf]
  %v928 = vld [vmem:[%s2 + $0xc0] sm:$0xf]
  %v978 = vunpack.c.l.b16 %v880
  %v979 = vunpack.c.l.b16 %v881
  %v980 = vunpack.c.l.b16 %v882
  %v981 = vunpack.c.l.b16 %v883
  %v982 = vunpack.c.l.b16 %v884
  %v983 = vunpack.c.l.b16 %v885
  %v984 = vunpack.c.l.b16 %v886
  %v985 = vunpack.c.l.b16 %v887
  %v986 = vunpack.c.l.b16 %v888
  %v987 = vunpack.c.l.b16 %v889
  %v988 = vunpack.c.l.b16 %v890
  %v989 = vunpack.c.l.b16 %v891
  %v990 = vunpack.c.l.b16 %v892
  %v991 = vunpack.c.l.b16 %v893
  %v992 = vunpack.c.l.b16 %v894
  %v993 = vunpack.c.l.b16 %v895
  %v994 = vunpack.c.l.b16 %v896
  %v995 = vunpack.c.l.b16 %v897
  %v996 = vunpack.c.l.b16 %v898
  %v997 = vunpack.c.l.b16 %v899
  %v998 = vunpack.c.l.b16 %v900
  %v999 = vunpack.c.l.b16 %v901
  %v1000 = vunpack.c.l.b16 %v902
  %v1001 = vunpack.c.l.b16 %v903
  %v1002 = vunpack.c.l.b16 %v904
  %v1003 = vunpack.c.l.b16 %v905
  %v1004 = vunpack.c.l.b16 %v906
  %v1005 = vunpack.c.l.b16 %v907
  %v1006 = vunpack.c.l.b16 %v908
  %v1007 = vunpack.c.l.b16 %v909
  %v1008 = vunpack.c.l.b16 %v910
  %v1009 = vunpack.c.l.b16 %v911
  %v1010 = vunpack.c.l.b16 %v912
  %v1011 = vunpack.c.l.b16 %v913
  %v1012 = vunpack.c.l.b16 %v914
  %v1013 = vunpack.c.l.b16 %v915
  %v1014 = vunpack.c.l.b16 %v916
  %v1015 = vunpack.c.l.b16 %v917
  %v1016 = vunpack.c.l.b16 %v918
  %v1017 = vunpack.c.l.b16 %v919
  %v1018 = vunpack.c.l.b16 %v920
  %v1019 = vunpack.c.l.b16 %v921
  %v1020 = vunpack.c.l.b16 %v922
  %v1021 = vunpack.c.l.b16 %v923
  %v1022 = vunpack.c.l.b16 %v924
  %v1023 = vunpack.c.l.b16 %v925
  %v1024 = vunpack.c.l.b16 %v926
  %v1025 = vunpack.c.l.b16 %v927
  %v1026 = vunpack.c.l.b16 %v928
  %v1027 = vpack.c.b16 %v979, %v978
  %v1028 = vpack.c.b16 %v981, %v980
  %v1029 = vpack.c.b16 %v983, %v982
  %v1030 = vpack.c.b16 %v985, %v984
  %v1031 = vpack.c.b16 %v987, %v986
  %v1032 = vpack.c.b16 %v989, %v988
  %v1033 = vpack.c.b16 %v991, %v990
  %v1034 = vpack.c.b16 %v993, %v992
  %v1035 = vpack.c.b16 %v995, %v994
  %v1036 = vpack.c.b16 %v997, %v996
  %v1037 = vpack.c.b16 %v999, %v998
  %v1038 = vpack.c.b16 %v1001, %v1000
  %v1039 = vpack.c.b16 %v1003, %v1002
  %v1040 = vpack.c.b16 %v1005, %v1004
  %v1041 = vpack.c.b16 %v1007, %v1006
  %v1042 = vpack.c.b16 %v1009, %v1008
  %v1043 = vpack.c.b16 %v1011, %v1010
  %v1044 = vpack.c.b16 %v1013, %v1012
  %v1045 = vpack.c.b16 %v1015, %v1014
  %v1046 = vpack.c.b16 %v1017, %v1016
  %v1047 = vpack.c.b16 %v1019, %v1018
  %v1048 = vpack.c.b16 %v1021, %v1020
  %v1049 = vpack.c.b16 %v1023, %v1022
  %v1050 = vpack.c.b16 %v1025, %v1024
  %v1051 = vpack.c.b16 %v1026, %v1026
  %v1053 = vsel %vm235, %v1027, 0
  %v1056 = vsel %vm235, %v1028, 0
  %v1059 = vsel %vm235, %v1029, 0
  %v1062 = vsel %vm235, %v1030, 0
  %v1065 = vsel %vm235, %v1031, 0
  %v1068 = vsel %vm235, %v1032, 0
  %v1071 = vsel %vm235, %v1033, 0
  %v1074 = vsel %vm235, %v1034, 0
  %v1077 = vsel %vm235, %v1035, 0
  %v1080 = vsel %vm235, %v1036, 0
  %v1083 = vsel %vm235, %v1037, 0
  %v1086 = vsel %vm235, %v1038, 0
  %v1089 = vsel %vm235, %v1039, 0
  %v1092 = vsel %vm235, %v1040, 0
  %v1095 = vsel %vm235, %v1041, 0
  %v1098 = vsel %vm235, %v1042, 0
  %v1101 = vsel %vm235, %v1043, 0
  %v1104 = vsel %vm235, %v1044, 0
  %v1107 = vsel %vm235, %v1045, 0
  %v1110 = vsel %vm235, %v1046, 0
  %v1113 = vsel %vm235, %v1047, 0
  %v1116 = vsel %vm235, %v1048, 0
  %v1119 = vsel %vm235, %v1049, 0
  %v1122 = vsel %vm235, %v1050, 0
  %v1125 = vsel %vm235, %v1051, 0
  %1127 = vmatpush.bf16.msra.mxu0 0
  %1128 = vmatpush.bf16.msra.mxu0 0
  %1129 = vmatpush.bf16.msra.mxu0 0
  %1130 = vmatpush.bf16.msra.mxu0 %v316
  %1131 = vmatpush.bf16.msra.mxu0 %v229
  %1132 = vmatpush.bf16.msra.mxu0 %v228
  %1133 = vmatpush.bf16.msra.mxu0 %v227
  %1134 = vmatpush.bf16.msra.mxu0 %v226
  %1135 = vmatmul.bf16.gmra.mxu0 %v1053
  %v1136 = vpop.f32.mrf.mxu0
  %v1137 = vadd.f32 0.0, %v1136
  %v1138 = vpop.f32.mrf.mxu0
  %v1139 = vadd.f32 0.0, %v1138
  %1140 = vmatmul.bf16.gmra.mxu0 %v1056
  %v1141 = vpop.f32.mrf.mxu0
  %v1142 = vadd.f32 0.0, %v1141
  %v1143 = vpop.f32.mrf.mxu0
  %v1144 = vadd.f32 0.0, %v1143
  %1145 = vmatmul.bf16.gmra.mxu0 %v1059
  %v1146 = vpop.f32.mrf.mxu0
  %v1147 = vadd.f32 0.0, %v1146
  %v1148 = vpop.f32.mrf.mxu0
  %v1149 = vadd.f32 0.0, %v1148
  %1150 = vmatmul.bf16.gmra.mxu0 %v1062
  %v1151 = vpop.f32.mrf.mxu0
  %v1152 = vadd.f32 0.0, %v1151
  %v1153 = vpop.f32.mrf.mxu0
  %v1154 = vadd.f32 0.0, %v1153
  %1155 = vmatmul.bf16.gmra.mxu0 %v1065
  %v1156 = vpop.f32.mrf.mxu0
  %v1157 = vadd.f32 0.0, %v1156
  %v1158 = vpop.f32.mrf.mxu0
  %v1159 = vadd.f32 0.0, %v1158
  %1160 = vmatmul.bf16.gmra.mxu0 %v1068
  %v1161 = vpop.f32.mrf.mxu0
  %v1162 = vadd.f32 0.0, %v1161
  %v1163 = vpop.f32.mrf.mxu0
  %v1164 = vadd.f32 0.0, %v1163
  %1165 = vmatmul.bf16.gmra.mxu0 %v1071
  %v1166 = vpop.f32.mrf.mxu0
  %v1167 = vadd.f32 0.0, %v1166
  %v1168 = vpop.f32.mrf.mxu0
  %v1169 = vadd.f32 0.0, %v1168
  %1170 = vmatmul.bf16.gmra.mxu0 %v1074
  %v1171 = vpop.f32.mrf.mxu0
  %v1172 = vadd.f32 0.0, %v1171
  %v1173 = vpop.f32.mrf.mxu0
  %v1174 = vadd.f32 0.0, %v1173
  %1175 = vmatmul.bf16.gmra.mxu0 %v1077
  %v1176 = vpop.f32.mrf.mxu0
  %v1177 = vadd.f32 0.0, %v1176
  %v1178 = vpop.f32.mrf.mxu0
  %v1179 = vadd.f32 0.0, %v1178
  %1180 = vmatmul.bf16.gmra.mxu0 %v1080
  %v1181 = vpop.f32.mrf.mxu0
  %v1182 = vadd.f32 0.0, %v1181
  %v1183 = vpop.f32.mrf.mxu0
  %v1184 = vadd.f32 0.0, %v1183
  %1185 = vmatmul.bf16.gmra.mxu0 %v1083
  %v1186 = vpop.f32.mrf.mxu0
  %v1187 = vadd.f32 0.0, %v1186
  %v1188 = vpop.f32.mrf.mxu0
  %v1189 = vadd.f32 0.0, %v1188
  %1190 = vmatmul.bf16.gmra.mxu0 %v1086
  %v1191 = vpop.f32.mrf.mxu0
  %v1192 = vadd.f32 0.0, %v1191
  %v1193 = vpop.f32.mrf.mxu0
  %v1194 = vadd.f32 0.0, %v1193
  %1195 = vmatmul.bf16.gmra.mxu0 %v1089
  %v1196 = vpop.f32.mrf.mxu0
  %v1197 = vadd.f32 0.0, %v1196
  %v1198 = vpop.f32.mrf.mxu0
  %v1199 = vadd.f32 0.0, %v1198
  %1200 = vmatmul.bf16.gmra.mxu0 %v1092
  %v1201 = vpop.f32.mrf.mxu0
  %v1202 = vadd.f32 0.0, %v1201
  %v1203 = vpop.f32.mrf.mxu0
  %v1204 = vadd.f32 0.0, %v1203
  %1205 = vmatmul.bf16.gmra.mxu0 %v1095
  %v1206 = vpop.f32.mrf.mxu0
  %v1207 = vadd.f32 0.0, %v1206
  %v1208 = vpop.f32.mrf.mxu0
  %v1209 = vadd.f32 0.0, %v1208
  %1210 = vmatmul.bf16.gmra.mxu0 %v1098
  %v1211 = vpop.f32.mrf.mxu0
  %v1212 = vadd.f32 0.0, %v1211
  %v1213 = vpop.f32.mrf.mxu0
  %v1214 = vadd.f32 0.0, %v1213
  %1215 = vmatmul.bf16.gmra.mxu0 %v1101
  %v1216 = vpop.f32.mrf.mxu0
  %v1217 = vadd.f32 0.0, %v1216
  %v1218 = vpop.f32.mrf.mxu0
  %v1219 = vadd.f32 0.0, %v1218
  %1220 = vmatmul.bf16.gmra.mxu0 %v1104
  %v1221 = vpop.f32.mrf.mxu0
  %v1222 = vadd.f32 0.0, %v1221
  %v1223 = vpop.f32.mrf.mxu0
  %v1224 = vadd.f32 0.0, %v1223
  %1225 = vmatmul.bf16.gmra.mxu0 %v1107
  %v1226 = vpop.f32.mrf.mxu0
  %v1227 = vadd.f32 0.0, %v1226
  %v1228 = vpop.f32.mrf.mxu0
  %v1229 = vadd.f32 0.0, %v1228
  %1230 = vmatmul.bf16.gmra.mxu0 %v1110
  %v1231 = vpop.f32.mrf.mxu0
  %v1232 = vadd.f32 0.0, %v1231
  %v1233 = vpop.f32.mrf.mxu0
  %v1234 = vadd.f32 0.0, %v1233
  %1235 = vmatmul.bf16.gmra.mxu0 %v1113
  %v1236 = vpop.f32.mrf.mxu0
  %v1237 = vadd.f32 0.0, %v1236
  %v1238 = vpop.f32.mrf.mxu0
  %v1239 = vadd.f32 0.0, %v1238
  %1240 = vmatmul.bf16.gmra.mxu0 %v1116
  %v1241 = vpop.f32.mrf.mxu0
  %v1242 = vadd.f32 0.0, %v1241
  %v1243 = vpop.f32.mrf.mxu0
  %v1244 = vadd.f32 0.0, %v1243
  %1245 = vmatmul.bf16.gmra.mxu0 %v1119
  %v1246 = vpop.f32.mrf.mxu0
  %v1247 = vadd.f32 0.0, %v1246
  %v1248 = vpop.f32.mrf.mxu0
  %v1249 = vadd.f32 0.0, %v1248
  %1250 = vmatmul.bf16.gmra.mxu0 %v1122
  %v1251 = vpop.f32.mrf.mxu0
  %v1252 = vadd.f32 0.0, %v1251
  %v1253 = vpop.f32.mrf.mxu0
  %v1254 = vadd.f32 0.0, %v1253
  %1255 = vmatmul.bf16.gmra.mxu0 %v1125
  %v1256 = vpop.f32.mrf.mxu0
  %v1257 = vadd.f32 0.0, %v1256
  %v1258 = vpop.f32.mrf.mxu0
  %1259 = vdwg.mxu0
  %v1260 = vld [vmem:[%s3] sm:$0xf]
  %v1261 = vld [vmem:[%s3 + $0x4] sm:$0xf]
  %v1262 = vld [vmem:[%s3 + $0x8] sm:$0xf]
  %v1263 = vld [vmem:[%s3 + $0xc] sm:$0xf]
  %v1264 = vld [vmem:[%s3 + $0x10] sm:$0xf]
  %v1265 = vld [vmem:[%s3 + $0x14] sm:$0xf]
  %v1266 = vld [vmem:[%s3 + $0x18] sm:$0xf]
  %v1267 = vld [vmem:[%s3 + $0x1c] sm:$0xf]
  %v1268 = vld [vmem:[%s3 + $0x20] sm:$0xf]
  %v1269 = vld [vmem:[%s3 + $0x24] sm:$0xf]
  %v1270 = vld [vmem:[%s3 + $0x28] sm:$0xf]
  %v1271 = vld [vmem:[%s3 + $0x2c] sm:$0xf]
  %v1272 = vld [vmem:[%s3 + $0x30] sm:$0xf]
  %v1273 = vld [vmem:[%s3 + $0x34] sm:$0xf]
  %v1274 = vld [vmem:[%s3 + $0x38] sm:$0xf]
  %v1275 = vld [vmem:[%s3 + $0x3c] sm:$0xf]
  %v1276 = vld [vmem:[%s3 + $0x40] sm:$0xf]
  %v1277 = vld [vmem:[%s3 + $0x44] sm:$0xf]
  %v1278 = vld [vmem:[%s3 + $0x48] sm:$0xf]
  %v1279 = vld [vmem:[%s3 + $0x4c] sm:$0xf]
  %v1280 = vld [vmem:[%s3 + $0x50] sm:$0xf]
  %v1281 = vld [vmem:[%s3 + $0x54] sm:$0xf]
  %v1282 = vld [vmem:[%s3 + $0x58] sm:$0xf]
  %v1283 = vld [vmem:[%s3 + $0x5c] sm:$0xf]
  %v1284 = vld [vmem:[%s3 + $0x60] sm:$0xf]
  %v1285 = vld [vmem:[%s3 + $0x64] sm:$0xf]
  %v1286 = vld [vmem:[%s3 + $0x68] sm:$0xf]
  %v1287 = vld [vmem:[%s3 + $0x6c] sm:$0xf]
  %v1288 = vld [vmem:[%s3 + $0x70] sm:$0xf]
  %v1289 = vld [vmem:[%s3 + $0x74] sm:$0xf]
  %v1290 = vld [vmem:[%s3 + $0x78] sm:$0xf]
  %v1291 = vld [vmem:[%s3 + $0x7c] sm:$0xf]
  %v1292 = vld [vmem:[%s3 + $0x80] sm:$0xf]
  %v1293 = vld [vmem:[%s3 + $0x84] sm:$0xf]
  %v1294 = vld [vmem:[%s3 + $0x88] sm:$0xf]
  %v1295 = vld [vmem:[%s3 + $0x8c] sm:$0xf]
  %v1296 = vld [vmem:[%s3 + $0x90] sm:$0xf]
  %v1297 = vld [vmem:[%s3 + $0x94] sm:$0xf]
  %v1298 = vld [vmem:[%s3 + $0x98] sm:$0xf]
  %v1299 = vld [vmem:[%s3 + $0x9c] sm:$0xf]
  %v1300 = vld [vmem:[%s3 + $0xa0] sm:$0xf]
  %v1301 = vld [vmem:[%s3 + $0xa4] sm:$0xf]
  %v1302 = vld [vmem:[%s3 + $0xa8] sm:$0xf]
  %v1303 = vld [vmem:[%s3 + $0xac] sm:$0xf]
  %v1304 = vld [vmem:[%s3 + $0xb0] sm:$0xf]
  %v1305 = vld [vmem:[%s3 + $0xb4] sm:$0xf]
  %v1306 = vld [vmem:[%s3 + $0xb8] sm:$0xf]
  %v1307 = vld [vmem:[%s3 + $0xbc] sm:$0xf]
  %v1308 = vld [vmem:[%s3 + $0xc0] sm:$0xf]
  %v1358 = vunpack.c.l.b16 %v1260
  %v1359 = vunpack.c.l.b16 %v1261
  %v1360 = vunpack.c.l.b16 %v1262
  %v1361 = vunpack.c.l.b16 %v1263
  %v1362 = vunpack.c.l.b16 %v1264
  %v1363 = vunpack.c.l.b16 %v1265
  %v1364 = vunpack.c.l.b16 %v1266
  %v1365 = vunpack.c.l.b16 %v1267
  %v1366 = vunpack.c.l.b16 %v1268
  %v1367 = vunpack.c.l.b16 %v1269
  %v1368 = vunpack.c.l.b16 %v1270
  %v1369 = vunpack.c.l.b16 %v1271
  %v1370 = vunpack.c.l.b16 %v1272
  %v1371 = vunpack.c.l.b16 %v1273
  %v1372 = vunpack.c.l.b16 %v1274
  %v1373 = vunpack.c.l.b16 %v1275
  %v1374 = vunpack.c.l.b16 %v1276
  %v1375 = vunpack.c.l.b16 %v1277
  %v1376 = vunpack.c.l.b16 %v1278
  %v1377 = vunpack.c.l.b16 %v1279
  %v1378 = vunpack.c.l.b16 %v1280
  %v1379 = vunpack.c.l.b16 %v1281
  %v1380 = vunpack.c.l.b16 %v1282
  %v1381 = vunpack.c.l.b16 %v1283
  %v1382 = vunpack.c.l.b16 %v1284
  %v1383 = vunpack.c.l.b16 %v1285
  %v1384 = vunpack.c.l.b16 %v1286
  %v1385 = vunpack.c.l.b16 %v1287
  %v1386 = vunpack.c.l.b16 %v1288
  %v1387 = vunpack.c.l.b16 %v1289
  %v1388 = vunpack.c.l.b16 %v1290
  %v1389 = vunpack.c.l.b16 %v1291
  %v1390 = vunpack.c.l.b16 %v1292
  %v1391 = vunpack.c.l.b16 %v1293
  %v1392 = vunpack.c.l.b16 %v1294
  %v1393 = vunpack.c.l.b16 %v1295
  %v1394 = vunpack.c.l.b16 %v1296
  %v1395 = vunpack.c.l.b16 %v1297
  %v1396 = vunpack.c.l.b16 %v1298
  %v1397 = vunpack.c.l.b16 %v1299
  %v1398 = vunpack.c.l.b16 %v1300
  %v1399 = vunpack.c.l.b16 %v1301
  %v1400 = vunpack.c.l.b16 %v1302
  %v1401 = vunpack.c.l.b16 %v1303
  %v1402 = vunpack.c.l.b16 %v1304
  %v1403 = vunpack.c.l.b16 %v1305
  %v1404 = vunpack.c.l.b16 %v1306
  %v1405 = vunpack.c.l.b16 %v1307
  %v1406 = vunpack.c.l.b16 %v1308
  %v1407 = vpack.c.b16 %v1359, %v1358
  %v1408 = vpack.c.b16 %v1361, %v1360
  %v1409 = vpack.c.b16 %v1363, %v1362
  %v1410 = vpack.c.b16 %v1365, %v1364
  %v1411 = vpack.c.b16 %v1367, %v1366
  %v1412 = vpack.c.b16 %v1369, %v1368
  %v1413 = vpack.c.b16 %v1371, %v1370
  %v1414 = vpack.c.b16 %v1373, %v1372
  %v1415 = vpack.c.b16 %v1375, %v1374
  %v1416 = vpack.c.b16 %v1377, %v1376
  %v1417 = vpack.c.b16 %v1379, %v1378
  %v1418 = vpack.c.b16 %v1381, %v1380
  %v1419 = vpack.c.b16 %v1383, %v1382
  %v1420 = vpack.c.b16 %v1385, %v1384
  %v1421 = vpack.c.b16 %v1387, %v1386
  %v1422 = vpack.c.b16 %v1389, %v1388
  %v1423 = vpack.c.b16 %v1391, %v1390
  %v1424 = vpack.c.b16 %v1393, %v1392
  %v1425 = vpack.c.b16 %v1395, %v1394
  %v1426 = vpack.c.b16 %v1397, %v1396
  %v1427 = vpack.c.b16 %v1399, %v1398
  %v1428 = vpack.c.b16 %v1401, %v1400
  %v1429 = vpack.c.b16 %v1403, %v1402
  %v1430 = vpack.c.b16 %v1405, %v1404
  %v1431 = vpack.c.b16 %v1406, %v1406
  %v1433 = vsel %vm235, %v1407, 0
  %v1436 = vsel %vm235, %v1408, 0
  %v1439 = vsel %vm235, %v1409, 0
  %v1442 = vsel %vm235, %v1410, 0
  %v1445 = vsel %vm235, %v1411, 0
  %v1448 = vsel %vm235, %v1412, 0
  %v1451 = vsel %vm235, %v1413, 0
  %v1454 = vsel %vm235, %v1414, 0
  %v1457 = vsel %vm235, %v1415, 0
  %v1460 = vsel %vm235, %v1416, 0
  %v1463 = vsel %vm235, %v1417, 0
  %v1466 = vsel %vm235, %v1418, 0
  %v1469 = vsel %vm235, %v1419, 0
  %v1472 = vsel %vm235, %v1420, 0
  %v1475 = vsel %vm235, %v1421, 0
  %v1478 = vsel %vm235, %v1422, 0
  %v1481 = vsel %vm235, %v1423, 0
  %v1484 = vsel %vm235, %v1424, 0
  %v1487 = vsel %vm235, %v1425, 0
  %v1490 = vsel %vm235, %v1426, 0
  %v1493 = vsel %vm235, %v1427, 0
  %v1496 = vsel %vm235, %v1428, 0
  %v1499 = vsel %vm235, %v1429, 0
  %v1502 = vsel %vm235, %v1430, 0
  %v1505 = vsel %vm235, %v1431, 0
  %1507 = vmatpush.bf16.msra.mxu0 0
  %1508 = vmatpush.bf16.msra.mxu0 0
  %1509 = vmatpush.bf16.msra.mxu0 0
  %1510 = vmatpush.bf16.msra.mxu0 %v316
  %1511 = vmatpush.bf16.msra.mxu0 %v229
  %1512 = vmatpush.bf16.msra.mxu0 %v228
  %1513 = vmatpush.bf16.msra.mxu0 %v227
  %1514 = vmatpush.bf16.msra.mxu0 %v226
  %1515 = vmatmul.bf16.gmra.mxu0 %v1433
  %v1516 = vpop.f32.mrf.mxu0
  %v1517 = vadd.f32 0.0, %v1516
  %v1518 = vpop.f32.mrf.mxu0
  %v1519 = vadd.f32 0.0, %v1518
  %1520 = vmatmul.bf16.gmra.mxu0 %v1436
  %v1521 = vpop.f32.mrf.mxu0
  %v1522 = vadd.f32 0.0, %v1521
  %v1523 = vpop.f32.mrf.mxu0
  %v1524 = vadd.f32 0.0, %v1523
  %1525 = vmatmul.bf16.gmra.mxu0 %v1439
  %v1526 = vpop.f32.mrf.mxu0
  %v1527 = vadd.f32 0.0, %v1526
  %v1528 = vpop.f32.mrf.mxu0
  %v1529 = vadd.f32 0.0, %v1528
  %1530 = vmatmul.bf16.gmra.mxu0 %v1442
  %v1531 = vpop.f32.mrf.mxu0
  %v1532 = vadd.f32 0.0, %v1531
  %v1533 = vpop.f32.mrf.mxu0
  %v1534 = vadd.f32 0.0, %v1533
  %1535 = vmatmul.bf16.gmra.mxu0 %v1445
  %v1536 = vpop.f32.mrf.mxu0
  %v1537 = vadd.f32 0.0, %v1536
  %v1538 = vpop.f32.mrf.mxu0
  %v1539 = vadd.f32 0.0, %v1538
  %1540 = vmatmul.bf16.gmra.mxu0 %v1448
  %v1541 = vpop.f32.mrf.mxu0
  %v1542 = vadd.f32 0.0, %v1541
  %v1543 = vpop.f32.mrf.mxu0
  %v1544 = vadd.f32 0.0, %v1543
  %1545 = vmatmul.bf16.gmra.mxu0 %v1451
  %v1546 = vpop.f32.mrf.mxu0
  %v1547 = vadd.f32 0.0, %v1546
  %v1548 = vpop.f32.mrf.mxu0
  %v1549 = vadd.f32 0.0, %v1548
  %1550 = vmatmul.bf16.gmra.mxu0 %v1454
  %v1551 = vpop.f32.mrf.mxu0
  %v1552 = vadd.f32 0.0, %v1551
  %v1553 = vpop.f32.mrf.mxu0
  %v1554 = vadd.f32 0.0, %v1553
  %1555 = vmatmul.bf16.gmra.mxu0 %v1457
  %v1556 = vpop.f32.mrf.mxu0
  %v1557 = vadd.f32 0.0, %v1556
  %v1558 = vpop.f32.mrf.mxu0
  %v1559 = vadd.f32 0.0, %v1558
  %1560 = vmatmul.bf16.gmra.mxu0 %v1460
  %v1561 = vpop.f32.mrf.mxu0
  %v1562 = vadd.f32 0.0, %v1561
  %v1563 = vpop.f32.mrf.mxu0
  %v1564 = vadd.f32 0.0, %v1563
  %1565 = vmatmul.bf16.gmra.mxu0 %v1463
  %v1566 = vpop.f32.mrf.mxu0
  %v1567 = vadd.f32 0.0, %v1566
  %v1568 = vpop.f32.mrf.mxu0
  %v1569 = vadd.f32 0.0, %v1568
  %1570 = vmatmul.bf16.gmra.mxu0 %v1466
  %v1571 = vpop.f32.mrf.mxu0
  %v1572 = vadd.f32 0.0, %v1571
  %v1573 = vpop.f32.mrf.mxu0
  %v1574 = vadd.f32 0.0, %v1573
  %1575 = vmatmul.bf16.gmra.mxu0 %v1469
  %v1576 = vpop.f32.mrf.mxu0
  %v1577 = vadd.f32 0.0, %v1576
  %v1578 = vpop.f32.mrf.mxu0
  %v1579 = vadd.f32 0.0, %v1578
  %1580 = vmatmul.bf16.gmra.mxu0 %v1472
  %v1581 = vpop.f32.mrf.mxu0
  %v1582 = vadd.f32 0.0, %v1581
  %v1583 = vpop.f32.mrf.mxu0
  %v1584 = vadd.f32 0.0, %v1583
  %1585 = vmatmul.bf16.gmra.mxu0 %v1475
  %v1586 = vpop.f32.mrf.mxu0
  %v1587 = vadd.f32 0.0, %v1586
  %v1588 = vpop.f32.mrf.mxu0
  %v1589 = vadd.f32 0.0, %v1588
  %1590 = vmatmul.bf16.gmra.mxu0 %v1478
  %v1591 = vpop.f32.mrf.mxu0
  %v1592 = vadd.f32 0.0, %v1591
  %v1593 = vpop.f32.mrf.mxu0
  %v1594 = vadd.f32 0.0, %v1593
  %1595 = vmatmul.bf16.gmra.mxu0 %v1481
  %v1596 = vpop.f32.mrf.mxu0
  %v1597 = vadd.f32 0.0, %v1596
  %v1598 = vpop.f32.mrf.mxu0
  %v1599 = vadd.f32 0.0, %v1598
  %1600 = vmatmul.bf16.gmra.mxu0 %v1484
  %v1601 = vpop.f32.mrf.mxu0
  %v1602 = vadd.f32 0.0, %v1601
  %v1603 = vpop.f32.mrf.mxu0
  %v1604 = vadd.f32 0.0, %v1603
  %1605 = vmatmul.bf16.gmra.mxu0 %v1487
  %v1606 = vpop.f32.mrf.mxu0
  %v1607 = vadd.f32 0.0, %v1606
  %v1608 = vpop.f32.mrf.mxu0
  %v1609 = vadd.f32 0.0, %v1608
  %1610 = vmatmul.bf16.gmra.mxu0 %v1490
  %v1611 = vpop.f32.mrf.mxu0
  %v1612 = vadd.f32 0.0, %v1611
  %v1613 = vpop.f32.mrf.mxu0
  %v1614 = vadd.f32 0.0, %v1613
  %1615 = vmatmul.bf16.gmra.mxu0 %v1493
  %v1616 = vpop.f32.mrf.mxu0
  %v1617 = vadd.f32 0.0, %v1616
  %v1618 = vpop.f32.mrf.mxu0
  %v1619 = vadd.f32 0.0, %v1618
  %1620 = vmatmul.bf16.gmra.mxu0 %v1496
  %v1621 = vpop.f32.mrf.mxu0
  %v1622 = vadd.f32 0.0, %v1621
  %v1623 = vpop.f32.mrf.mxu0
  %v1624 = vadd.f32 0.0, %v1623
  %1625 = vmatmul.bf16.gmra.mxu0 %v1499
  %v1626 = vpop.f32.mrf.mxu0
  %v1627 = vadd.f32 0.0, %v1626
  %v1628 = vpop.f32.mrf.mxu0
  %v1629 = vadd.f32 0.0, %v1628
  %1630 = vmatmul.bf16.gmra.mxu0 %v1502
  %v1631 = vpop.f32.mrf.mxu0
  %v1632 = vadd.f32 0.0, %v1631
  %v1633 = vpop.f32.mrf.mxu0
  %v1634 = vadd.f32 0.0, %v1633
  %1635 = vmatmul.bf16.gmra.mxu0 %v1505
  %v1636 = vpop.f32.mrf.mxu0
  %v1637 = vadd.f32 0.0, %v1636
  %v1638 = vpop.f32.mrf.mxu0
  %1639 = vdwg.mxu0
  %v1640 = vmax.f32 %v1137, %v1517
  %v1641 = vmax.f32 %v1139, %v1519
  %v1642 = vmax.f32 %v1142, %v1522
  %v1643 = vmax.f32 %v1144, %v1524
  %v1644 = vmax.f32 %v1147, %v1527
  %v1645 = vmax.f32 %v1149, %v1529
  %v1646 = vmax.f32 %v1152, %v1532
  %v1647 = vmax.f32 %v1154, %v1534
  %v1648 = vmax.f32 %v1157, %v1537
  %v1649 = vmax.f32 %v1159, %v1539
  %v1650 = vmax.f32 %v1162, %v1542
  %v1651 = vmax.f32 %v1164, %v1544
  %v1652 = vmax.f32 %v1167, %v1547
  %v1653 = vmax.f32 %v1169, %v1549
  %v1654 = vmax.f32 %v1172, %v1552
  %v1655 = vmax.f32 %v1174, %v1554
  %v1656 = vmax.f32 %v1177, %v1557
  %v1657 = vmax.f32 %v1179, %v1559
  %v1658 = vmax.f32 %v1182, %v1562
  %v1659 = vmax.f32 %v1184, %v1564
  %v1660 = vmax.f32 %v1187, %v1567
  %v1661 = vmax.f32 %v1189, %v1569
  %v1662 = vmax.f32 %v1192, %v1572
  %v1663 = vmax.f32 %v1194, %v1574
  %v1664 = vmax.f32 %v1197, %v1577
  %v1665 = vmax.f32 %v1199, %v1579
  %v1666 = vmax.f32 %v1202, %v1582
  %v1667 = vmax.f32 %v1204, %v1584
  %v1668 = vmax.f32 %v1207, %v1587
  %v1669 = vmax.f32 %v1209, %v1589
  %v1670 = vmax.f32 %v1212, %v1592
  %v1671 = vmax.f32 %v1214, %v1594
  %v1672 = vmax.f32 %v1217, %v1597
  %v1673 = vmax.f32 %v1219, %v1599
  %v1674 = vmax.f32 %v1222, %v1602
  %v1675 = vmax.f32 %v1224, %v1604
  %v1676 = vmax.f32 %v1227, %v1607
  %v1677 = vmax.f32 %v1229, %v1609
  %v1678 = vmax.f32 %v1232, %v1612
  %v1679 = vmax.f32 %v1234, %v1614
  %v1680 = vmax.f32 %v1237, %v1617
  %v1681 = vmax.f32 %v1239, %v1619
  %v1682 = vmax.f32 %v1242, %v1622
  %v1683 = vmax.f32 %v1244, %v1624
  %v1684 = vmax.f32 %v1247, %v1627
  %v1685 = vmax.f32 %v1249, %v1629
  %v1686 = vmax.f32 %v1252, %v1632
  %v1687 = vmax.f32 %v1254, %v1634
  %v1688 = vmax.f32 %v1257, %v1637
  %v1689 = vmax.f32 %v831, %v1640
  %v1690 = vmax.f32 %v832, %v1641
  %v1691 = vmax.f32 %v833, %v1642
  %v1692 = vmax.f32 %v834, %v1643
  %v1693 = vmax.f32 %v835, %v1644
  %v1694 = vmax.f32 %v836, %v1645
  %v1695 = vmax.f32 %v837, %v1646
  %v1696 = vmax.f32 %v838, %v1647
  %v1697 = vmax.f32 %v839, %v1648
  %v1698 = vmax.f32 %v840, %v1649
  %v1699 = vmax.f32 %v841, %v1650
  %v1700 = vmax.f32 %v842, %v1651
  %v1701 = vmax.f32 %v843, %v1652
  %v1702 = vmax.f32 %v844, %v1653
  %v1703 = vmax.f32 %v845, %v1654
  %v1704 = vmax.f32 %v846, %v1655
  %v1705 = vmax.f32 %v847, %v1656
  %v1706 = vmax.f32 %v848, %v1657
  %v1707 = vmax.f32 %v849, %v1658
  %v1708 = vmax.f32 %v850, %v1659
  %v1709 = vmax.f32 %v851, %v1660
  %v1710 = vmax.f32 %v852, %v1661
  %v1711 = vmax.f32 %v853, %v1662
  %v1712 = vmax.f32 %v854, %v1663
  %v1713 = vmax.f32 %v855, %v1664
  %v1714 = vmax.f32 %v856, %v1665
  %v1715 = vmax.f32 %v857, %v1666
  %v1716 = vmax.f32 %v858, %v1667
  %v1717 = vmax.f32 %v859, %v1668
  %v1718 = vmax.f32 %v860, %v1669
  %v1719 = vmax.f32 %v861, %v1670
  %v1720 = vmax.f32 %v862, %v1671
  %v1721 = vmax.f32 %v863, %v1672
  %v1722 = vmax.f32 %v864, %v1673
  %v1723 = vmax.f32 %v865, %v1674
  %v1724 = vmax.f32 %v866, %v1675
  %v1725 = vmax.f32 %v867, %v1676
  %v1726 = vmax.f32 %v868, %v1677
  %v1727 = vmax.f32 %v869, %v1678
  %v1728 = vmax.f32 %v870, %v1679
  %v1729 = vmax.f32 %v871, %v1680
  %v1730 = vmax.f32 %v872, %v1681
  %v1731 = vmax.f32 %v873, %v1682
  %v1732 = vmax.f32 %v874, %v1683
  %v1733 = vmax.f32 %v875, %v1684
  %v1734 = vmax.f32 %v876, %v1685
  %v1735 = vmax.f32 %v877, %v1686
  %v1736 = vmax.f32 %v878, %v1687
  %v1737 = vmax.f32 %v879, %v1688
  %v1738 = vld [vmem:[%s5] sm:$0x1]
  %v1740 = vperm.slane %v1738, 0
  %v1742 = vadd.f32 %v1689, %v1740
  %v1743 = vadd.f32 %v1690, %v1740
  %v1744 = vadd.f32 %v1691, %v1740
  %v1745 = vadd.f32 %v1692, %v1740
  %v1746 = vadd.f32 %v1693, %v1740
  %v1747 = vadd.f32 %v1694, %v1740
  %v1748 = vadd.f32 %v1695, %v1740
  %v1749 = vadd.f32 %v1696, %v1740
  %v1750 = vadd.f32 %v1697, %v1740
  %v1751 = vadd.f32 %v1698, %v1740
  %v1752 = vadd.f32 %v1699, %v1740
  %v1753 = vadd.f32 %v1700, %v1740
  %v1754 = vadd.f32 %v1701, %v1740
  %v1755 = vadd.f32 %v1702, %v1740
  %v1756 = vadd.f32 %v1703, %v1740
  %v1757 = vadd.f32 %v1704, %v1740
  %v1758 = vadd.f32 %v1705, %v1740
  %v1759 = vadd.f32 %v1706, %v1740
  %v1760 = vadd.f32 %v1707, %v1740
  %v1761 = vadd.f32 %v1708, %v1740
  %v1762 = vadd.f32 %v1709, %v1740
  %v1763 = vadd.f32 %v1710, %v1740
  %v1764 = vadd.f32 %v1711, %v1740
  %v1765 = vadd.f32 %v1712, %v1740
  %v1766 = vadd.f32 %v1713, %v1740
  %v1767 = vadd.f32 %v1714, %v1740
  %v1768 = vadd.f32 %v1715, %v1740
  %v1769 = vadd.f32 %v1716, %v1740
  %v1770 = vadd.f32 %v1717, %v1740
  %v1771 = vadd.f32 %v1718, %v1740
  %v1772 = vadd.f32 %v1719, %v1740
  %v1773 = vadd.f32 %v1720, %v1740
  %v1774 = vadd.f32 %v1721, %v1740
  %v1775 = vadd.f32 %v1722, %v1740
  %v1776 = vadd.f32 %v1723, %v1740
  %v1777 = vadd.f32 %v1724, %v1740
  %v1778 = vadd.f32 %v1725, %v1740
  %v1779 = vadd.f32 %v1726, %v1740
  %v1780 = vadd.f32 %v1727, %v1740
  %v1781 = vadd.f32 %v1728, %v1740
  %v1782 = vadd.f32 %v1729, %v1740
  %v1783 = vadd.f32 %v1730, %v1740
  %v1784 = vadd.f32 %v1731, %v1740
  %v1785 = vadd.f32 %v1732, %v1740
  %v1786 = vadd.f32 %v1733, %v1740
  %v1787 = vadd.f32 %v1734, %v1740
  %v1788 = vadd.f32 %v1735, %v1740
  %v1789 = vadd.f32 %v1736, %v1740
  %v1790 = vadd.f32 %v1737, %v1740
  %v1791 = vmax.f32 %v1742, 0.0
  %v1792 = vmax.f32 %v1743, 0.0
  %v1793 = vmax.f32 %v1744, 0.0
  %v1794 = vmax.f32 %v1745, 0.0
  %v1795 = vmax.f32 %v1746, 0.0
  %v1796 = vmax.f32 %v1747, 0.0
  %v1797 = vmax.f32 %v1748, 0.0
  %v1798 = vmax.f32 %v1749, 0.0
  %v1799 = vmax.f32 %v1750, 0.0
  %v1800 = vmax.f32 %v1751, 0.0
  %v1801 = vmax.f32 %v1752, 0.0
  %v1802 = vmax.f32 %v1753, 0.0
  %v1803 = vmax.f32 %v1754, 0.0
  %v1804 = vmax.f32 %v1755, 0.0
  %v1805 = vmax.f32 %v1756, 0.0
  %v1806 = vmax.f32 %v1757, 0.0
  %v1807 = vmax.f32 %v1758, 0.0
  %v1808 = vmax.f32 %v1759, 0.0
  %v1809 = vmax.f32 %v1760, 0.0
  %v1810 = vmax.f32 %v1761, 0.0
  %v1811 = vmax.f32 %v1762, 0.0
  %v1812 = vmax.f32 %v1763, 0.0
  %v1813 = vmax.f32 %v1764, 0.0
  %v1814 = vmax.f32 %v1765, 0.0
  %v1815 = vmax.f32 %v1766, 0.0
  %v1816 = vmax.f32 %v1767, 0.0
  %v1817 = vmax.f32 %v1768, 0.0
  %v1818 = vmax.f32 %v1769, 0.0
  %v1819 = vmax.f32 %v1770, 0.0
  %v1820 = vmax.f32 %v1771, 0.0
  %v1821 = vmax.f32 %v1772, 0.0
  %v1822 = vmax.f32 %v1773, 0.0
  %v1823 = vmax.f32 %v1774, 0.0
  %v1824 = vmax.f32 %v1775, 0.0
  %v1825 = vmax.f32 %v1776, 0.0
  %v1826 = vmax.f32 %v1777, 0.0
  %v1827 = vmax.f32 %v1778, 0.0
  %v1828 = vmax.f32 %v1779, 0.0
  %v1829 = vmax.f32 %v1780, 0.0
  %v1830 = vmax.f32 %v1781, 0.0
  %v1831 = vmax.f32 %v1782, 0.0
  %v1832 = vmax.f32 %v1783, 0.0
  %v1833 = vmax.f32 %v1784, 0.0
  %v1834 = vmax.f32 %v1785, 0.0
  %v1835 = vmax.f32 %v1786, 0.0
  %v1836 = vmax.f32 %v1787, 0.0
  %v1837 = vmax.f32 %v1788, 0.0
  %v1838 = vmax.f32 %v1789, 0.0
  %v1839 = vmax.f32 %v1790, 0.0
  %v1840 = vpack.c.bf16 %v1791, %v1791
  %v1841 = vpack.c.bf16 %v1792, %v1792
  %v1842 = vpack.c.bf16 %v1793, %v1793
  %v1843 = vpack.c.bf16 %v1794, %v1794
  %v1844 = vpack.c.bf16 %v1795, %v1795
  %v1845 = vpack.c.bf16 %v1796, %v1796
  %v1846 = vpack.c.bf16 %v1797, %v1797
  %v1847 = vpack.c.bf16 %v1798, %v1798
  %v1848 = vpack.c.bf16 %v1799, %v1799
  %v1849 = vpack.c.bf16 %v1800, %v1800
  %v1850 = vpack.c.bf16 %v1801, %v1801
  %v1851 = vpack.c.bf16 %v1802, %v1802
  %v1852 = vpack.c.bf16 %v1803, %v1803
  %v1853 = vpack.c.bf16 %v1804, %v1804
  %v1854 = vpack.c.bf16 %v1805, %v1805
  %v1855 = vpack.c.bf16 %v1806, %v1806
  %v1856 = vpack.c.bf16 %v1807, %v1807
  %v1857 = vpack.c.bf16 %v1808, %v1808
  %v1858 = vpack.c.bf16 %v1809, %v1809
  %v1859 = vpack.c.bf16 %v1810, %v1810
  %v1860 = vpack.c.bf16 %v1811, %v1811
  %v1861 = vpack.c.bf16 %v1812, %v1812
  %v1862 = vpack.c.bf16 %v1813, %v1813
  %v1863 = vpack.c.bf16 %v1814, %v1814
  %v1864 = vpack.c.bf16 %v1815, %v1815
  %v1865 = vpack.c.bf16 %v1816, %v1816
  %v1866 = vpack.c.bf16 %v1817, %v1817
  %v1867 = vpack.c.bf16 %v1818, %v1818
  %v1868 = vpack.c.bf16 %v1819, %v1819
  %v1869 = vpack.c.bf16 %v1820, %v1820
  %v1870 = vpack.c.bf16 %v1821, %v1821
  %v1871 = vpack.c.bf16 %v1822, %v1822
  %v1872 = vpack.c.bf16 %v1823, %v1823
  %v1873 = vpack.c.bf16 %v1824, %v1824
  %v1874 = vpack.c.bf16 %v1825, %v1825
  %v1875 = vpack.c.bf16 %v1826, %v1826
  %v1876 = vpack.c.bf16 %v1827, %v1827
  %v1877 = vpack.c.bf16 %v1828, %v1828
  %v1878 = vpack.c.bf16 %v1829, %v1829
  %v1879 = vpack.c.bf16 %v1830, %v1830
  %v1880 = vpack.c.bf16 %v1831, %v1831
  %v1881 = vpack.c.bf16 %v1832, %v1832
  %v1882 = vpack.c.bf16 %v1833, %v1833
  %v1883 = vpack.c.bf16 %v1834, %v1834
  %v1884 = vpack.c.bf16 %v1835, %v1835
  %v1885 = vpack.c.bf16 %v1836, %v1836
  %v1886 = vpack.c.bf16 %v1837, %v1837
  %v1887 = vpack.c.bf16 %v1838, %v1838
  %v1888 = vpack.c.bf16 %v1839, %v1839
  %1889 = vst [vmem:[%s6] sm:$0xf] %v1840
  %1890 = vst [vmem:[%s6 + $0x4] sm:$0xf] %v1841
  %1891 = vst [vmem:[%s6 + $0x8] sm:$0xf] %v1842
  %1892 = vst [vmem:[%s6 + $0xc] sm:$0xf] %v1843
  %1893 = vst [vmem:[%s6 + $0x10] sm:$0xf] %v1844
  %1894 = vst [vmem:[%s6 + $0x14] sm:$0xf] %v1845
  %1895 = vst [vmem:[%s6 + $0x18] sm:$0xf] %v1846
  %1896 = vst [vmem:[%s6 + $0x1c] sm:$0xf] %v1847
  %1897 = vst [vmem:[%s6 + $0x20] sm:$0xf] %v1848
  %1898 = vst [vmem:[%s6 + $0x24] sm:$0xf] %v1849
  %1899 = vst [vmem:[%s6 + $0x28] sm:$0xf] %v1850
  %1900 = vst [vmem:[%s6 + $0x2c] sm:$0xf] %v1851
  %1901 = vst [vmem:[%s6 + $0x30] sm:$0xf] %v1852
  %1902 = vst [vmem:[%s6 + $0x34] sm:$0xf] %v1853
  %1903 = vst [vmem:[%s6 + $0x38] sm:$0xf] %v1854
  %1904 = vst [vmem:[%s6 + $0x3c] sm:$0xf] %v1855
  %1905 = vst [vmem:[%s6 + $0x40] sm:$0xf] %v1856
  %1906 = vst [vmem:[%s6 + $0x44] sm:$0xf] %v1857
  %1907 = vst [vmem:[%s6 + $0x48] sm:$0xf] %v1858
  %1908 = vst [vmem:[%s6 + $0x4c] sm:$0xf] %v1859
  %1909 = vst [vmem:[%s6 + $0x50] sm:$0xf] %v1860
  %1910 = vst [vmem:[%s6 + $0x54] sm:$0xf] %v1861
  %1911 = vst [vmem:[%s6 + $0x58] sm:$0xf] %v1862
  %1912 = vst [vmem:[%s6 + $0x5c] sm:$0xf] %v1863
  %1913 = vst [vmem:[%s6 + $0x60] sm:$0xf] %v1864
  %1914 = vst [vmem:[%s6 + $0x64] sm:$0xf] %v1865
  %1915 = vst [vmem:[%s6 + $0x68] sm:$0xf] %v1866
  %1916 = vst [vmem:[%s6 + $0x6c] sm:$0xf] %v1867
  %1917 = vst [vmem:[%s6 + $0x70] sm:$0xf] %v1868
  %1918 = vst [vmem:[%s6 + $0x74] sm:$0xf] %v1869
  %1919 = vst [vmem:[%s6 + $0x78] sm:$0xf] %v1870
  %1920 = vst [vmem:[%s6 + $0x7c] sm:$0xf] %v1871
  %1921 = vst [vmem:[%s6 + $0x80] sm:$0xf] %v1872
  %1922 = vst [vmem:[%s6 + $0x84] sm:$0xf] %v1873
  %1923 = vst [vmem:[%s6 + $0x88] sm:$0xf] %v1874
  %1924 = vst [vmem:[%s6 + $0x8c] sm:$0xf] %v1875
  %1925 = vst [vmem:[%s6 + $0x90] sm:$0xf] %v1876
  %1926 = vst [vmem:[%s6 + $0x94] sm:$0xf] %v1877
  %1927 = vst [vmem:[%s6 + $0x98] sm:$0xf] %v1878
  %1928 = vst [vmem:[%s6 + $0x9c] sm:$0xf] %v1879
  %1929 = vst [vmem:[%s6 + $0xa0] sm:$0xf] %v1880
  %1930 = vst [vmem:[%s6 + $0xa4] sm:$0xf] %v1881
  %1931 = vst [vmem:[%s6 + $0xa8] sm:$0xf] %v1882
  %1932 = vst [vmem:[%s6 + $0xac] sm:$0xf] %v1883
  %1933 = vst [vmem:[%s6 + $0xb0] sm:$0xf] %v1884
  %1934 = vst [vmem:[%s6 + $0xb4] sm:$0xf] %v1885
  %1935 = vst [vmem:[%s6 + $0xb8] sm:$0xf] %v1886
  %1936 = vst [vmem:[%s6 + $0xbc] sm:$0xf] %v1887
  %1937 = vst [vmem:[%s6 + $0xc0] sm:$0xf] %v1888
  // Predicated region
  $region26: #{net_forward.3} parent=0 // pred_check
    _
  $region27: #{net_forward.3} parent=0 // pred_check_branch
    %1939 = sbr.rel (0) target = $region29
  $region28: #{net_forward.3} parent=0 // pred_region
    _
  $region29: #{net_forward.3} parent=0 // pred_fallthru
    _
  // Predicated region
  $region30: #{net_forward.3} parent=0 // pred_check
    _
  $region31: #{net_forward.3} parent=0 // pred_check_branch
    %1941 = sbr.rel (0) target = $region33
  $region32: #{net_forward.3} parent=0 // pred_region
    _
  $region33: #{net_forward.3} parent=0 // pred_fallthru
    _

// kernel: net_forward.5
$region0: #{net_forward.5}
  #allocation0 [shape = 'u32[]', space=smem, size = 0x4, offset = 0x4, fixed_abs, tag = 'smem constant byte address 0x4 - core index']
  #allocation1 [shape = 'u32[72,128]{1,0:T(1,128)}', space=vmem, size = 0x9000, scoped, tag = 'internal scratch']
  %s0 = inlined_call_operand.vmem [shape: bf16[2,400], index: 0, kind: input, shape index: {}]
  %s1 = inlined_call_operand.vmem [shape: bf16[400,128], index: 1, kind: input, shape index: {}]
  %s2 = inlined_call_operand.vmem [shape: f32[1,128], index: 2, kind: input, shape index: {}]
  %s3 = inlined_call_operand.vmem [shape: bf16[128,128], index: 3, kind: input, shape index: {}]
  %s4 = inlined_call_operand.vmem [shape: f32[1,128], index: 4, kind: input, shape index: {}]
  %s5 = inlined_call_operand.vmem [shape: bf16[128,128], index: 5, kind: input, shape index: {}]
  %s6 = inlined_call_operand.vmem [shape: f32[1,128], index: 6, kind: input, shape index: {}]
  %s7 = inlined_call_operand.hbm [shape: f32[2,128], index: 7, kind: output, shape index: {}]
  %s8 = sld [smem:[#allocation0]]
  $region38: #{net_forward.5} parent=0
    _
  %s10 = ssub.s32 1, %s8
  %s11 = scalar_select 0, %s10, %s8
  $region1: #{net_forward.5} parent=0
    #allocation2 [shape = 'u8[1024]{0}', space=vmem, size = 0x400, scoped, tag = 'output window, operand 0, single buffered']
    #allocation3 [shape = 's32[1]{0}', space=sflag, size = 0x4, scoped, tag = 'scoped memory for net_forward.5']
    %12 = vsyncpa [#allocation3], 0
    // Predicated region
    $region2: #{net_forward.5} parent=1 // pred_check
      _
    $region3: #{net_forward.5} parent=1 // pred_check_branch
      %14 = sbr.rel (0) target = $region5
    $region4: #{net_forward.5} parent=1 // pred_region
      _
    $region5: #{net_forward.5} parent=1 // pred_fallthru
      _
    // Predicated region
    $region6: #{net_forward.5} parent=1 // pred_check
      _
    $region7: #{net_forward.5} parent=1 // pred_check_branch
      %16 = sbr.rel (0) target = $region9
    $region8: #{net_forward.5} parent=1 // pred_region
      _
    $region9: #{net_forward.5} parent=1 // pred_fallthru
      _
    // Predicated region
    $region10: #{net_forward.5} parent=1 // pred_check
      _
    $region11: #{net_forward.5} parent=1 // pred_check_branch
      %18 = sbr.rel (0) target = $region13
    $region12: #{net_forward.5} parent=1 // pred_region
      _
    $region13: #{net_forward.5} parent=1 // pred_fallthru
      _
    // Predicated region
    $region14: #{net_forward.5} parent=1 // pred_check
      _
    $region15: #{net_forward.5} parent=1 // pred_check_branch
      %20 = sbr.rel (0) target = $region17
    $region16: #{net_forward.5} parent=1 // pred_region
      _
    $region17: #{net_forward.5} parent=1 // pred_fallthru
      _
    // Predicated region
    $region18: #{net_forward.5} parent=1 // pred_check
      _
    $region19: #{net_forward.5} parent=1 // pred_check_branch
      %22 = sbr.rel (0) target = $region21
    $region20: #{net_forward.5} parent=1 // pred_region
      _
    $region21: #{net_forward.5} parent=1 // pred_fallthru
      _
    // Predicated region
    $region22: #{net_forward.5} parent=1 // pred_check
      _
    $region23: #{net_forward.5} parent=1 // pred_check_branch
      %24 = sbr.rel (0) target = $region25
    $region24: #{net_forward.5} parent=1 // pred_region
      _
    $region25: #{net_forward.5} parent=1 // pred_fallthru
      _
    // Predicated region
    $region26: #{net_forward.5} parent=1 // pred_check
      _
    $region27: #{net_forward.5} parent=1 // pred_check_branch
      %26 = sbr.rel (0) target = $region29
    $region28: #{net_forward.5} parent=1 // pred_region
      _
    $region29: #{net_forward.5} parent=1 // pred_fallthru
      _
    %v28 = vld [vmem:[%s0] sm:$0xf]
    %v29 = vld [vmem:[%s1] sm:$0xf]
    %v30 = vld [vmem:[%s1 + $0x4] sm:$0xf]
    %v31 = vld [vmem:[%s1 + $0x8] sm:$0xf]
    %v32 = vld [vmem:[%s1 + $0xc] sm:$0xf]
    %v33 = vld [vmem:[%s1 + $0x10] sm:$0xf]
    %v34 = vld [vmem:[%s1 + $0x14] sm:$0xf]
    %v35 = vld [vmem:[%s1 + $0x18] sm:$0xf]
    %v36 = vld [vmem:[%s1 + $0x1c] sm:$0xf]
    %v37 = vld [vmem:[%s1 + $0x20] sm:$0xf]
    %v38 = vld [vmem:[%s1 + $0x24] sm:$0xf]
    %v39 = vld [vmem:[%s1 + $0x28] sm:$0xf]
    %v40 = vld [vmem:[%s1 + $0x2c] sm:$0xf]
    %v41 = vld [vmem:[%s1 + $0x30] sm:$0xf]
    %v42 = vld [vmem:[%s1 + $0x34] sm:$0xf]
    %v43 = vld [vmem:[%s1 + $0x38] sm:$0xf]
    %v44 = vld [vmem:[%s1 + $0x3c] sm:$0xf]
    %v45 = vld [vmem:[%s1 + $0x40] sm:$0xf]
    %v46 = vld [vmem:[%s1 + $0x44] sm:$0xf]
    %v47 = vld [vmem:[%s1 + $0x48] sm:$0xf]
    %v48 = vld [vmem:[%s1 + $0x4c] sm:$0xf]
    %v49 = vld [vmem:[%s1 + $0x50] sm:$0xf]
    %v50 = vld [vmem:[%s1 + $0x54] sm:$0xf]
    %v51 = vld [vmem:[%s1 + $0x58] sm:$0xf]
    %v52 = vld [vmem:[%s1 + $0x5c] sm:$0xf]
    %v53 = vld [vmem:[%s1 + $0x60] sm:$0xf]
    %v54 = vld [vmem:[%s1 + $0x64] sm:$0xf]
    %v55 = vld [vmem:[%s1 + $0x68] sm:$0xf]
    %v56 = vld [vmem:[%s1 + $0x6c] sm:$0xf]
    %v57 = vld [vmem:[%s1 + $0x70] sm:$0xf]
    %v58 = vld [vmem:[%s1 + $0x74] sm:$0xf]
    %v59 = vld [vmem:[%s1 + $0x78] sm:$0xf]
    %v60 = vld [vmem:[%s1 + $0x7c] sm:$0xf]
    %v61 = vld [vmem:[%s1 + $0x80] sm:$0xf]
    %v62 = vld [vmem:[%s1 + $0x84] sm:$0xf]
    %v63 = vld [vmem:[%s1 + $0x88] sm:$0xf]
    %v64 = vld [vmem:[%s1 + $0x8c] sm:$0xf]
    %v65 = vld [vmem:[%s1 + $0x90] sm:$0xf]
    %v66 = vld [vmem:[%s1 + $0x94] sm:$0xf]
    %v67 = vld [vmem:[%s1 + $0x98] sm:$0xf]
    %v68 = vld [vmem:[%s1 + $0x9c] sm:$0xf]
    %v69 = vld [vmem:[%s1 + $0xa0] sm:$0xf]
    %v70 = vld [vmem:[%s1 + $0xa4] sm:$0xf]
    %v71 = vld [vmem:[%s1 + $0xa8] sm:$0xf]
    %v72 = vld [vmem:[%s1 + $0xac] sm:$0xf]
    %v73 = vld [vmem:[%s1 + $0xb0] sm:$0xf]
    %v74 = vld [vmem:[%s1 + $0xb4] sm:$0xf]
    %v75 = vld [vmem:[%s1 + $0xb8] sm:$0xf]
    %v76 = vld [vmem:[%s1 + $0xbc] sm:$0xf]
    %v77 = vld [vmem:[%s1 + $0xc0] sm:$0xf]
    %v78 = vld [vmem:[%s1 + $0xc4] sm:$0xf]
    %v79 = vld [vmem:[%s2] sm:$0x1]
    %v81 = vperm.slane %v79, 0
    %84 = vst [vmem:[#allocation1] ss:$9 sm:$0xff] %v28
    %v85 = vld [vmem:[#allocation1] sm:$0xff]
    %v86 = vld [vmem:[#allocation1 + $0x9] sm:$0xff]
    %v87 = vld [vmem:[#allocation1 + $0x12] sm:$0xff]
    %v88 = vld [vmem:[#allocation1 + $0x1b] sm:$0xff]
    %v142 = vunpack.c.l.b16 %v29
    %v143 = vunpack.c.l.b16 %v30
    %v144 = vunpack.c.l.b16 %v31
    %v145 = vunpack.c.l.b16 %v32
    %v146 = vunpack.c.l.b16 %v33
    %v147 = vunpack.c.l.b16 %v34
    %v148 = vunpack.c.l.b16 %v35
    %v149 = vunpack.c.l.b16 %v36
    %v150 = vunpack.c.l.b16 %v37
    %v151 = vunpack.c.l.b16 %v38
    %v152 = vunpack.c.l.b16 %v39
    %v153 = vunpack.c.l.b16 %v40
    %v154 = vunpack.c.l.b16 %v41
    %v155 = vunpack.c.l.b16 %v42
    %v156 = vunpack.c.l.b16 %v43
    %v157 = vunpack.c.l.b16 %v44
    %v158 = vunpack.c.l.b16 %v45
    %v159 = vunpack.c.l.b16 %v46
    %v160 = vunpack.c.l.b16 %v47
    %v161 = vunpack.c.l.b16 %v48
    %v162 = vunpack.c.l.b16 %v49
    %v163 = vunpack.c.l.b16 %v50
    %v164 = vunpack.c.l.b16 %v51
    %v165 = vunpack.c.l.b16 %v52
    %v166 = vunpack.c.l.b16 %v53
    %v167 = vunpack.c.l.b16 %v54
    %v168 = vunpack.c.l.b16 %v55
    %v169 = vunpack.c.l.b16 %v56
    %v170 = vunpack.c.l.b16 %v57
    %v171 = vunpack.c.l.b16 %v58
    %v172 = vunpack.c.l.b16 %v59
    %v173 = vunpack.c.l.b16 %v60
    %v174 = vunpack.c.l.b16 %v61
    %v175 = vunpack.c.l.b16 %v62
    %v176 = vunpack.c.l.b16 %v63
    %v177 = vunpack.c.l.b16 %v64
    %v178 = vunpack.c.l.b16 %v65
    %v179 = vunpack.c.l.b16 %v66
    %v180 = vunpack.c.l.b16 %v67
    %v181 = vunpack.c.l.b16 %v68
    %v182 = vunpack.c.l.b16 %v69
    %v183 = vunpack.c.l.b16 %v70
    %v184 = vunpack.c.l.b16 %v71
    %v185 = vunpack.c.l.b16 %v72
    %v186 = vunpack.c.l.b16 %v73
    %v187 = vunpack.c.l.b16 %v74
    %v188 = vunpack.c.l.b16 %v75
    %v189 = vunpack.c.l.b16 %v76
    %v190 = vunpack.c.l.b16 %v77
    %v191 = vunpack.c.l.b16 %v78
    %v192 = vpack.c.b16 %v143, %v142
    %v193 = vpack.c.b16 %v145, %v144
    %v194 = vpack.c.b16 %v147, %v146
    %v195 = vpack.c.b16 %v149, %v148
    %v196 = vpack.c.b16 %v151, %v150
    %v197 = vpack.c.b16 %v153, %v152
    %v198 = vpack.c.b16 %v155, %v154
    %v199 = vpack.c.b16 %v157, %v156
    %v200 = vpack.c.b16 %v159, %v158
    %v201 = vpack.c.b16 %v161, %v160
    %v202 = vpack.c.b16 %v163, %v162
    %v203 = vpack.c.b16 %v165, %v164
    %v204 = vpack.c.b16 %v167, %v166
    %v205 = vpack.c.b16 %v169, %v168
    %v206 = vpack.c.b16 %v171, %v170
    %v207 = vpack.c.b16 %v173, %v172
    %v208 = vpack.c.b16 %v175, %v174
    %v209 = vpack.c.b16 %v177, %v176
    %v210 = vpack.c.b16 %v179, %v178
    %v211 = vpack.c.b16 %v181, %v180
    %v212 = vpack.c.b16 %v183, %v182
    %v213 = vpack.c.b16 %v185, %v184
    %v214 = vpack.c.b16 %v187, %v186
    %v215 = vpack.c.b16 %v189, %v188
    %v216 = vpack.c.b16 %v191, %v190
    %vm242 = vcmask 130048
    %v243 = vsel %vm242, %v88, 0
    %245 = vmatpush.bf16.msra.mxu0 %v199
    %246 = vmatpush.bf16.msra.mxu0 %v198
    %247 = vmatpush.bf16.msra.mxu0 %v197
    %248 = vmatpush.bf16.msra.mxu0 %v196
    %249 = vmatpush.bf16.msra.mxu0 %v195
    %250 = vmatpush.bf16.msra.mxu0 %v194
    %251 = vmatpush.bf16.msra.mxu0 %v193
    %252 = vmatpush.bf16.msra.mxu0 %v192
    %253 = vmatmul.bf16.gmra.mxu0 %v85
    %v254 = vpop.f32.mrf.mxu0
    %v255 = vadd.f32 %v81, %v254
    %v256 = vpop.f32.mrf.mxu0
    %257 = vdwg.mxu0
    %258 = vmatpush.bf16.msra.mxu0 %v207
    %259 = vmatpush.bf16.msra.mxu0 %v206
    %260 = vmatpush.bf16.msra.mxu0 %v205
    %261 = vmatpush.bf16.msra.mxu0 %v204
    %262 = vmatpush.bf16.msra.mxu0 %v203
    %263 = vmatpush.bf16.msra.mxu0 %v202
    %264 = vmatpush.bf16.msra.mxu0 %v201
    %265 = vmatpush.bf16.msra.mxu0 %v200
    %266 = vmatmul.bf16.gmra.mxu0 %v86
    %v267 = vpop.f32.mrf.mxu0
    %v268 = vadd.f32 %v255, %v267
    %v269 = vpop.f32.mrf.mxu0
    %270 = vdwg.mxu0
    %271 = vmatpush.bf16.msra.mxu0 %v215
    %272 = vmatpush.bf16.msra.mxu0 %v214
    %273 = vmatpush.bf16.msra.mxu0 %v213
    %274 = vmatpush.bf16.msra.mxu0 %v212
    %275 = vmatpush.bf16.msra.mxu0 %v211
    %276 = vmatpush.bf16.msra.mxu0 %v210
    %277 = vmatpush.bf16.msra.mxu0 %v209
    %278 = vmatpush.bf16.msra.mxu0 %v208
    %279 = vmatmul.bf16.gmra.mxu0 %v87
    %v280 = vpop.f32.mrf.mxu0
    %v281 = vadd.f32 %v268, %v280
    %v282 = vpop.f32.mrf.mxu0
    %283 = vdwg.mxu0
    %284 = vmatpush.bf16.msra.mxu0 0
    %285 = vmatpush.bf16.msra.mxu0 0
    %286 = vmatpush.bf16.msra.mxu0 0
    %287 = vmatpush.bf16.msra.mxu0 0
    %288 = vmatpush.bf16.msra.mxu0 0
    %289 = vmatpush.bf16.msra.mxu0 0
    %290 = vmatpush.bf16.msra.mxu0 0
    %291 = vmatpush.bf16.msra.mxu0 %v216
    %292 = vmatmul.bf16.gmra.mxu0 %v243
    %v293 = vpop.f32.mrf.mxu0
    %v294 = vadd.f32 %v281, %v293
    %v295 = vpop.f32.mrf.mxu0
    %296 = vdwg.mxu0
    %v297 = vmax.f32 %v294, 0.0
    %v298 = vpack.c.bf16 %v297, %v297
    %v299 = vld [vmem:[%s3] sm:$0xf]
    %v300 = vld [vmem:[%s3 + $0x4] sm:$0xf]
    %v301 = vld [vmem:[%s3 + $0x8] sm:$0xf]
    %v302 = vld [vmem:[%s3 + $0xc] sm:$0xf]
    %v303 = vld [vmem:[%s3 + $0x10] sm:$0xf]
    %v304 = vld [vmem:[%s3 + $0x14] sm:$0xf]
    %v305 = vld [vmem:[%s3 + $0x18] sm:$0xf]
    %v306 = vld [vmem:[%s3 + $0x1c] sm:$0xf]
    %v307 = vld [vmem:[%s3 + $0x20] sm:$0xf]
    %v308 = vld [vmem:[%s3 + $0x24] sm:$0xf]
    %v309 = vld [vmem:[%s3 + $0x28] sm:$0xf]
    %v310 = vld [vmem:[%s3 + $0x2c] sm:$0xf]
    %v311 = vld [vmem:[%s3 + $0x30] sm:$0xf]
    %v312 = vld [vmem:[%s3 + $0x34] sm:$0xf]
    %v313 = vld [vmem:[%s3 + $0x38] sm:$0xf]
    %v314 = vld [vmem:[%s3 + $0x3c] sm:$0xf]
    %v315 = vld [vmem:[%s4] sm:$0x1]
    %v317 = vperm.slane %v315, 0
    %v335 = vunpack.c.l.b16 %v299
    %v336 = vunpack.c.l.b16 %v300
    %v337 = vunpack.c.l.b16 %v301
    %v338 = vunpack.c.l.b16 %v302
    %v339 = vunpack.c.l.b16 %v303
    %v340 = vunpack.c.l.b16 %v304
    %v341 = vunpack.c.l.b16 %v305
    %v342 = vunpack.c.l.b16 %v306
    %v343 = vunpack.c.l.b16 %v307
    %v344 = vunpack.c.l.b16 %v308
    %v345 = vunpack.c.l.b16 %v309
    %v346 = vunpack.c.l.b16 %v310
    %v347 = vunpack.c.l.b16 %v311
    %v348 = vunpack.c.l.b16 %v312
    %v349 = vunpack.c.l.b16 %v313
    %v350 = vunpack.c.l.b16 %v314
    %v351 = vpack.c.b16 %v336, %v335
    %v352 = vpack.c.b16 %v338, %v337
    %v353 = vpack.c.b16 %v340, %v339
    %v354 = vpack.c.b16 %v342, %v341
    %v355 = vpack.c.b16 %v344, %v343
    %v356 = vpack.c.b16 %v346, %v345
    %v357 = vpack.c.b16 %v348, %v347
    %v358 = vpack.c.b16 %v350, %v349
    %367 = vmatpush.bf16.msra.mxu0 %v358
    %368 = vmatpush.bf16.msra.mxu0 %v357
    %369 = vmatpush.bf16.msra.mxu0 %v356
    %370 = vmatpush.bf16.msra.mxu0 %v355
    %371 = vmatpush.bf16.msra.mxu0 %v354
    %372 = vmatpush.bf16.msra.mxu0 %v353
    %373 = vmatpush.bf16.msra.mxu0 %v352
    %374 = vmatpush.bf16.msra.mxu0 %v351
    %375 = vmatmul.bf16.gmra.mxu0 %v298
    %v376 = vpop.f32.mrf.mxu0
    %v377 = vadd.f32 %v317, %v376
    %v378 = vpop.f32.mrf.mxu0
    %379 = vdwg.mxu0
    %v380 = vmax.f32 %v377, 0.0
    %v381 = vpack.c.bf16 %v380, %v380
    %v382 = vld [vmem:[%s5] sm:$0xf]
    %v383 = vld [vmem:[%s5 + $0x4] sm:$0xf]
    %v384 = vld [vmem:[%s5 + $0x8] sm:$0xf]
    %v385 = vld [vmem:[%s5 + $0xc] sm:$0xf]
    %v386 = vld [vmem:[%s5 + $0x10] sm:$0xf]
    %v387 = vld [vmem:[%s5 + $0x14] sm:$0xf]
    %v388 = vld [vmem:[%s5 + $0x18] sm:$0xf]
    %v389 = vld [vmem:[%s5 + $0x1c] sm:$0xf]
    %v390 = vld [vmem:[%s5 + $0x20] sm:$0xf]
    %v391 = vld [vmem:[%s5 + $0x24] sm:$0xf]
    %v392 = vld [vmem:[%s5 + $0x28] sm:$0xf]
    %v393 = vld [vmem:[%s5 + $0x2c] sm:$0xf]
    %v394 = vld [vmem:[%s5 + $0x30] sm:$0xf]
    %v395 = vld [vmem:[%s5 + $0x34] sm:$0xf]
    %v396 = vld [vmem:[%s5 + $0x38] sm:$0xf]
    %v397 = vld [vmem:[%s5 + $0x3c] sm:$0xf]
    %v398 = vld [vmem:[%s6] sm:$0x1]
    %v400 = vperm.slane %v398, 0
    %v418 = vunpack.c.l.b16 %v382
    %v419 = vunpack.c.l.b16 %v383
    %v420 = vunpack.c.l.b16 %v384
    %v421 = vunpack.c.l.b16 %v385
    %v422 = vunpack.c.l.b16 %v386
    %v423 = vunpack.c.l.b16 %v387
    %v424 = vunpack.c.l.b16 %v388
    %v425 = vunpack.c.l.b16 %v389
    %v426 = vunpack.c.l.b16 %v390
    %v427 = vunpack.c.l.b16 %v391
    %v428 = vunpack.c.l.b16 %v392
    %v429 = vunpack.c.l.b16 %v393
    %v430 = vunpack.c.l.b16 %v394
    %v431 = vunpack.c.l.b16 %v395
    %v432 = vunpack.c.l.b16 %v396
    %v433 = vunpack.c.l.b16 %v397
    %v434 = vpack.c.b16 %v419, %v418
    %v435 = vpack.c.b16 %v421, %v420
    %v436 = vpack.c.b16 %v423, %v422
    %v437 = vpack.c.b16 %v425, %v424
    %v438 = vpack.c.b16 %v427, %v426
    %v439 = vpack.c.b16 %v429, %v428
    %v440 = vpack.c.b16 %v431, %v430
    %v441 = vpack.c.b16 %v433, %v432
    %450 = vmatpush.bf16.msra.mxu0 %v441
    %451 = vmatpush.bf16.msra.mxu0 %v440
    %452 = vmatpush.bf16.msra.mxu0 %v439
    %453 = vmatpush.bf16.msra.mxu0 %v438
    %454 = vmatpush.bf16.msra.mxu0 %v437
    %455 = vmatpush.bf16.msra.mxu0 %v436
    %456 = vmatpush.bf16.msra.mxu0 %v435
    %457 = vmatpush.bf16.msra.mxu0 %v434
    %458 = vmatmul.bf16.gmra.mxu0 %v381
    %v459 = vpop.f32.mrf.mxu0
    %v460 = vadd.f32 %v400, %v459
    %v461 = vpop.f32.mrf.mxu0
    %462 = vdwg.mxu0
    %463 = vst [vmem:[#allocation2] sm:$0x3] %v460
    // Predicated region
    $region30: #{net_forward.5} parent=1 // pred_check
      _
    $region31: #{net_forward.5} parent=1 // pred_check_branch
      %465 = sbr.rel (0) target = $region33
    $region32: #{net_forward.5} parent=1 // pred_region
      %467 = vsyncadd [#allocation3], 0
      %s469 = sshll.u32 [#allocation2], 4
      %s470 = int_to_ptr.vmem [resolvable:$true] %s469
      %s471 = sshll.u32 %s7, 4
      %s472 = int_to_ptr.hbm [resolvable:$true] %s471
      %474 = dma.vmem_to_hbm [thread:$0]  %s470, 32, %s472, [#allocation3]
    $region33: #{net_forward.5} parent=1 // pred_fallthru
      _
    // Predicated region
    $region34: #{net_forward.5} parent=1 // pred_check
      _
    $region35: #{net_forward.5} parent=1 // pred_check_branch
      %476 = sbr.rel (0) target = $region37
    $region36: #{net_forward.5} parent=1 // pred_region
      %478 = dma.done [#allocation3], 32
    $region37: #{net_forward.5} parent=1 // pred_fallthru
      _
    %479 = vsyncpa [#allocation3], 1

</llo_original>
